<compile_context>
chip_gen: v7x
topology: tpu7x:2x2x1
jax: 0.10.0
libtpu: 0.0.40
codegen_flags: <defaults>
</compile_context>

<pallas_src>
import jax
import jax.numpy as jnp
from jax.experimental import pallas as pl
from jax.experimental.pallas import tpu as pltpu

CLASS_ALL = 11
N_IN = 235
# layer sizes: in -> out
LAYER_DIMS = [(N_IN, 235), (235, 168), (168, 148), (148, 128),
              (128, 64), (64, 32), (32, CLASS_ALL)]

LANE = 128


def _round_up(x, m):
    return (x + m - 1) // m * m


# Lane-padded layer dims.
PAD_IN = _round_up(N_IN, LANE)                                  # 256
PAD_OUTS = [_round_up(o, LANE) for (_, o) in LAYER_DIMS]        # 256,256,256,128,128,128,128
PAD_INS = [PAD_IN] + PAD_OUTS[:-1]


def mlp_kernel(x_ref,
               w1_ref, b1_ref, w2_ref, b2_ref, w3_ref, b3_ref,
               w4_ref, b4_ref, w5_ref, b5_ref, w6_ref, b6_ref,
               w7_ref, b7_ref,
               o_ref):
    # TODO(synk): training-mode dropout (p=0.5) not implemented; eval-mode
    # (identity) semantics are used here, so relu(dropout(fc(x))) == relu(fc(x)).
    def dense(h, w_ref, b_ref, relu=True):
        # bf16 x bf16 matmul on the MXU, f32 accumulation.
        y = jnp.dot(h.astype(jnp.bfloat16), w_ref[...],
                    preferred_element_type=jnp.float32)
        y = y + b_ref[...]              # (1, out) f32 bias broadcasts over batch
        return jnp.maximum(y, 0.0) if relu else y

    h = x_ref[...]                      # (TB, 256) f32
    h = dense(h, w1_ref, b1_ref)
    h = dense(h, w2_ref, b2_ref)
    h = dense(h, w3_ref, b3_ref)
    h = dense(h, w4_ref, b4_ref)
    h = dense(h, w5_ref, b5_ref)
    h = dense(h, w6_ref, b6_ref)
    # final layer: no relu, no dropout
    o_ref[...] = dense(h, w7_ref, b7_ref, relu=False).astype(o_ref.dtype)


def init_params(key):
    """Deterministic init mimicking nn.Linear default (uniform +-1/sqrt(fan_in)).

    Returns UNPADDED f32 weights already transposed to [in, out] and biases
    as [1, out].
    """
    params = []
    for (fan_in, fan_out) in LAYER_DIMS:
        key, kw, kb = jax.random.split(key, 3)
        bound = 1.0 / jnp.sqrt(jnp.float32(fan_in))
        w = jax.random.uniform(kw, (fan_in, fan_out), jnp.float32, -bound, bound)
        b = jax.random.uniform(kb, (1, fan_out), jnp.float32, -bound, bound)
        params.append((w, b))
    return params


def _pad_params(params):
    """Zero-pad weights/biases to lane-dense tiles; weights -> bf16, biases -> f32."""
    flat = []
    for li, (w, b) in enumerate(params):
        kin, kout = PAD_INS[li], PAD_OUTS[li]
        wp = jnp.zeros((kin, kout), jnp.bfloat16)
        wp = wp.at[:w.shape[0], :w.shape[1]].set(w.astype(jnp.bfloat16))
        bp = jnp.zeros((1, kout), jnp.float32)
        bp = bp.at[:, :b.shape[1]].set(b)
        flat.extend([wp, bp])
    return flat


def mlp_forward(x, params, *, block_batch=256):
    batch = x.shape[0]
    flat = _pad_params(params)

    # Batch tile: multiple of 16 rows (bf16 sublane packing), capped at
    # block_batch (256 rows: ~0.53 MiB of bf16 weights + <1 MiB of
    # double-buffered activation tiles -> fits default scoped VMEM on
    # v5e / v6e / v7x).
    tb = min(block_batch, _round_up(batch, 16))
    batch_pad = _round_up(batch, tb)

    xp = jnp.zeros((batch_pad, PAD_IN), jnp.float32)
    xp = xp.at[:batch, :N_IN].set(x.astype(jnp.float32))

    grid = (batch_pad // tb,)

    in_specs = [pl.BlockSpec((tb, PAD_IN), lambda i: (i, 0))]
    for li in range(len(LAYER_DIMS)):
        kin, kout = PAD_INS[li], PAD_OUTS[li]
        # Constant index_map -> weight/bias tiles stay resident across steps.
        in_specs.append(pl.BlockSpec((kin, kout), lambda i: (0, 0)))
        in_specs.append(pl.BlockSpec((1, kout), lambda i: (0, 0)))
    out_spec = pl.BlockSpec((tb, PAD_OUTS[-1]), lambda i: (i, 0))

    out_pad = pl.pallas_call(
        mlp_kernel,
        out_shape=jax.ShapeDtypeStruct((batch_pad, PAD_OUTS[-1]), jnp.float32),
        grid=grid,
        in_specs=in_specs,
        out_specs=out_spec,
        compiler_params=pltpu.CompilerParams(
            dimension_semantics=("parallel",)),
    )(xp, *flat)

    # Slice padded rows / classes back out (padding is exact zeros, so the
    # first CLASS_ALL columns are bit-identical to the unpadded computation).
    return out_pad[:batch, :CLASS_ALL]


def mlp_reference(x, params):
    """Pure-JAX reference with the same bf16-matmul / f32-accumulate numerics."""
    h = x.astype(jnp.float32)
    for i, (w, b) in enumerate(params):
        y = jnp.dot(h.astype(jnp.bfloat16), w.astype(jnp.bfloat16),
                    preferred_element_type=jnp.float32) + b
        h = jnp.maximum(y, 0.0) if i < len(params) - 1 else y
    return h


if __name__ == "__main__":
    key = jax.random.PRNGKey(0)
    key, kx = jax.random.split(key)
    batch = 8
    x = jax.random.normal(kx, (batch, N_IN), jnp.float32)

    params = init_params(jax.random.PRNGKey(0))

    out = mlp_forward(x, params)
    out = jax.block_until_ready(out)

    ref = mlp_reference(x, params)
    assert out.shape == (batch, CLASS_ALL), out.shape
    assert jnp.allclose(out, ref, atol=1e-3, rtol=1e-3), "mismatch vs reference"

    print("KERNEL_OK")
</pallas_src>

<mosaic_0001>
module attributes {stable_mosaic.version = 11 : i64} {
  func.func @mlp_kernel(%arg0: i32, %arg1: memref<16x256xf32, #tpu.memory_space<vmem>>, %arg2: memref<256x256xbf16, #tpu.memory_space<vmem>>, %arg3: memref<1x256xf32, #tpu.memory_space<vmem>>, %arg4: memref<256x256xbf16, #tpu.memory_space<vmem>>, %arg5: memref<1x256xf32, #tpu.memory_space<vmem>>, %arg6: memref<256x256xbf16, #tpu.memory_space<vmem>>, %arg7: memref<1x256xf32, #tpu.memory_space<vmem>>, %arg8: memref<256x128xbf16, #tpu.memory_space<vmem>>, %arg9: memref<1x128xf32, #tpu.memory_space<vmem>>, %arg10: memref<128x128xbf16, #tpu.memory_space<vmem>>, %arg11: memref<1x128xf32, #tpu.memory_space<vmem>>, %arg12: memref<128x128xbf16, #tpu.memory_space<vmem>>, %arg13: memref<1x128xf32, #tpu.memory_space<vmem>>, %arg14: memref<128x128xbf16, #tpu.memory_space<vmem>>, %arg15: memref<1x128xf32, #tpu.memory_space<vmem>>, %arg16: memref<16x128xf32, #tpu.memory_space<vmem>>) attributes {dimension_semantics = [#tpu.dimension_semantics<parallel>], iteration_bounds = array<i64: 1>, scalar_prefetch = 0 : i64, scratch_operands = 0 : i64, tpu.core_type = #tpu.core_type<tc>, window_params = [{transform_indices = @transform_0, window_bounds = array<i64: 16, 256>}, {pipeline_mode = #tpu.pipeline_mode<synchronous>, transform_indices = @transform_1, window_bounds = array<i64: 256, 256>}, {pipeline_mode = #tpu.pipeline_mode<synchronous>, transform_indices = @transform_2, window_bounds = array<i64: 1, 256>}, {pipeline_mode = #tpu.pipeline_mode<synchronous>, transform_indices = @transform_3, window_bounds = array<i64: 256, 256>}, {pipeline_mode = #tpu.pipeline_mode<synchronous>, transform_indices = @transform_4, window_bounds = array<i64: 1, 256>}, {pipeline_mode = #tpu.pipeline_mode<synchronous>, transform_indices = @transform_5, window_bounds = array<i64: 256, 256>}, {pipeline_mode = #tpu.pipeline_mode<synchronous>, transform_indices = @transform_6, window_bounds = array<i64: 1, 256>}, {pipeline_mode = #tpu.pipeline_mode<synchronous>, transform_indices = @transform_7, window_bounds = array<i64: 256, 128>}, {pipeline_mode = #tpu.pipeline_mode<synchronous>, transform_indices = @transform_8, window_bounds = array<i64: 1, 128>}, {pipeline_mode = #tpu.pipeline_mode<synchronous>, transform_indices = @transform_9, window_bounds = array<i64: 128, 128>}, {pipeline_mode = #tpu.pipeline_mode<synchronous>, transform_indices = @transform_10, window_bounds = array<i64: 1, 128>}, {pipeline_mode = #tpu.pipeline_mode<synchronous>, transform_indices = @transform_11, window_bounds = array<i64: 128, 128>}, {pipeline_mode = #tpu.pipeline_mode<synchronous>, transform_indices = @transform_12, window_bounds = array<i64: 1, 128>}, {pipeline_mode = #tpu.pipeline_mode<synchronous>, transform_indices = @transform_13, window_bounds = array<i64: 128, 128>}, {pipeline_mode = #tpu.pipeline_mode<synchronous>, transform_indices = @transform_14, window_bounds = array<i64: 1, 128>}, {transform_indices = @transform_15, window_bounds = array<i64: 16, 128>}]} {
    %c0 = arith.constant 0 : index
    %c0_0 = arith.constant 0 : index
    %0 = vector.load %arg1[%c0, %c0_0] : memref<16x256xf32, #tpu.memory_space<vmem>>, vector<16x256xf32>
    %1 = arith.truncf %0 : vector<16x256xf32> to vector<16x256xbf16>
    %c0_1 = arith.constant 0 : index
    %c0_2 = arith.constant 0 : index
    %2 = vector.load %arg2[%c0_1, %c0_2] : memref<256x256xbf16, #tpu.memory_space<vmem>>, vector<256x256xbf16>
    %cst = arith.constant dense<0.000000e+00> : vector<16x256xf32>
    %3 = tpu.matmul %1, %2, %cst {dimension_numbers = #tpu.dot_dimension_numbers<[1], [0], [0], [1], [0, 0, 1, 1], [], []>} : vector<16x256xbf16>, vector<256x256xbf16>, vector<16x256xf32> -> vector<16x256xf32>
    %c0_3 = arith.constant 0 : index
    %c0_4 = arith.constant 0 : index
    %4 = vector.load %arg3[%c0_3, %c0_4] : memref<1x256xf32, #tpu.memory_space<vmem>>, vector<1x256xf32>
    %5 = vector.broadcast %4 : vector<1x256xf32> to vector<16x256xf32>
    %6 = arith.addf %3, %5 : vector<16x256xf32>
    %cst_5 = arith.constant 0.000000e+00 : f32
    %7 = vector.broadcast %cst_5 : f32 to vector<16x256xf32>
    %8 = arith.maximumf %6, %7 : vector<16x256xf32>
    %9 = arith.truncf %8 : vector<16x256xf32> to vector<16x256xbf16>
    %c0_6 = arith.constant 0 : index
    %c0_7 = arith.constant 0 : index
    %10 = vector.load %arg4[%c0_6, %c0_7] : memref<256x256xbf16, #tpu.memory_space<vmem>>, vector<256x256xbf16>
    %cst_8 = arith.constant dense<0.000000e+00> : vector<16x256xf32>
    %11 = tpu.matmul %9, %10, %cst_8 {dimension_numbers = #tpu.dot_dimension_numbers<[1], [0], [0], [1], [0, 0, 1, 1], [], []>} : vector<16x256xbf16>, vector<256x256xbf16>, vector<16x256xf32> -> vector<16x256xf32>
    %c0_9 = arith.constant 0 : index
    %c0_10 = arith.constant 0 : index
    %12 = vector.load %arg5[%c0_9, %c0_10] : memref<1x256xf32, #tpu.memory_space<vmem>>, vector<1x256xf32>
    %13 = vector.broadcast %12 : vector<1x256xf32> to vector<16x256xf32>
    %14 = arith.addf %11, %13 : vector<16x256xf32>
    %cst_11 = arith.constant 0.000000e+00 : f32
    %15 = vector.broadcast %cst_11 : f32 to vector<16x256xf32>
    %16 = arith.maximumf %14, %15 : vector<16x256xf32>
    %17 = arith.truncf %16 : vector<16x256xf32> to vector<16x256xbf16>
    %c0_12 = arith.constant 0 : index
    %c0_13 = arith.constant 0 : index
    %18 = vector.load %arg6[%c0_12, %c0_13] : memref<256x256xbf16, #tpu.memory_space<vmem>>, vector<256x256xbf16>
    %cst_14 = arith.constant dense<0.000000e+00> : vector<16x256xf32>
    %19 = tpu.matmul %17, %18, %cst_14 {dimension_numbers = #tpu.dot_dimension_numbers<[1], [0], [0], [1], [0, 0, 1, 1], [], []>} : vector<16x256xbf16>, vector<256x256xbf16>, vector<16x256xf32> -> vector<16x256xf32>
    %c0_15 = arith.constant 0 : index
    %c0_16 = arith.constant 0 : index
    %20 = vector.load %arg7[%c0_15, %c0_16] : memref<1x256xf32, #tpu.memory_space<vmem>>, vector<1x256xf32>
    %21 = vector.broadcast %20 : vector<1x256xf32> to vector<16x256xf32>
    %22 = arith.addf %19, %21 : vector<16x256xf32>
    %cst_17 = arith.constant 0.000000e+00 : f32
    %23 = vector.broadcast %cst_17 : f32 to vector<16x256xf32>
    %24 = arith.maximumf %22, %23 : vector<16x256xf32>
    %25 = arith.truncf %24 : vector<16x256xf32> to vector<16x256xbf16>
    %c0_18 = arith.constant 0 : index
    %c0_19 = arith.constant 0 : index
    %26 = vector.load %arg8[%c0_18, %c0_19] : memref<256x128xbf16, #tpu.memory_space<vmem>>, vector<256x128xbf16>
    %cst_20 = arith.constant dense<0.000000e+00> : vector<16x128xf32>
    %27 = tpu.matmul %25, %26, %cst_20 {dimension_numbers = #tpu.dot_dimension_numbers<[1], [0], [0], [1], [0, 0, 1, 1], [], []>} : vector<16x256xbf16>, vector<256x128xbf16>, vector<16x128xf32> -> vector<16x128xf32>
    %c0_21 = arith.constant 0 : index
    %c0_22 = arith.constant 0 : index
    %28 = vector.load %arg9[%c0_21, %c0_22] : memref<1x128xf32, #tpu.memory_space<vmem>>, vector<1x128xf32>
    %29 = vector.broadcast %28 : vector<1x128xf32> to vector<16x128xf32>
    %30 = arith.addf %27, %29 : vector<16x128xf32>
    %cst_23 = arith.constant 0.000000e+00 : f32
    %31 = vector.broadcast %cst_23 : f32 to vector<16x128xf32>
    %32 = arith.maximumf %30, %31 : vector<16x128xf32>
    %33 = arith.truncf %32 : vector<16x128xf32> to vector<16x128xbf16>
    %c0_24 = arith.constant 0 : index
    %c0_25 = arith.constant 0 : index
    %34 = vector.load %arg10[%c0_24, %c0_25] : memref<128x128xbf16, #tpu.memory_space<vmem>>, vector<128x128xbf16>
    %cst_26 = arith.constant dense<0.000000e+00> : vector<16x128xf32>
    %35 = tpu.matmul %33, %34, %cst_26 {dimension_numbers = #tpu.dot_dimension_numbers<[1], [0], [0], [1], [0, 0, 1, 1], [], []>} : vector<16x128xbf16>, vector<128x128xbf16>, vector<16x128xf32> -> vector<16x128xf32>
    %c0_27 = arith.constant 0 : index
    %c0_28 = arith.constant 0 : index
    %36 = vector.load %arg11[%c0_27, %c0_28] : memref<1x128xf32, #tpu.memory_space<vmem>>, vector<1x128xf32>
    %37 = vector.broadcast %36 : vector<1x128xf32> to vector<16x128xf32>
    %38 = arith.addf %35, %37 : vector<16x128xf32>
    %cst_29 = arith.constant 0.000000e+00 : f32
    %39 = vector.broadcast %cst_29 : f32 to vector<16x128xf32>
    %40 = arith.maximumf %38, %39 : vector<16x128xf32>
    %41 = arith.truncf %40 : vector<16x128xf32> to vector<16x128xbf16>
    %c0_30 = arith.constant 0 : index
    %c0_31 = arith.constant 0 : index
    %42 = vector.load %arg12[%c0_30, %c0_31] : memref<128x128xbf16, #tpu.memory_space<vmem>>, vector<128x128xbf16>
    %cst_32 = arith.constant dense<0.000000e+00> : vector<16x128xf32>
    %43 = tpu.matmul %41, %42, %cst_32 {dimension_numbers = #tpu.dot_dimension_numbers<[1], [0], [0], [1], [0, 0, 1, 1], [], []>} : vector<16x128xbf16>, vector<128x128xbf16>, vector<16x128xf32> -> vector<16x128xf32>
    %c0_33 = arith.constant 0 : index
    %c0_34 = arith.constant 0 : index
    %44 = vector.load %arg13[%c0_33, %c0_34] : memref<1x128xf32, #tpu.memory_space<vmem>>, vector<1x128xf32>
    %45 = vector.broadcast %44 : vector<1x128xf32> to vector<16x128xf32>
    %46 = arith.addf %43, %45 : vector<16x128xf32>
    %cst_35 = arith.constant 0.000000e+00 : f32
    %47 = vector.broadcast %cst_35 : f32 to vector<16x128xf32>
    %48 = arith.maximumf %46, %47 : vector<16x128xf32>
    %49 = arith.truncf %48 : vector<16x128xf32> to vector<16x128xbf16>
    %c0_36 = arith.constant 0 : index
    %c0_37 = arith.constant 0 : index
    %50 = vector.load %arg14[%c0_36, %c0_37] : memref<128x128xbf16, #tpu.memory_space<vmem>>, vector<128x128xbf16>
    %cst_38 = arith.constant dense<0.000000e+00> : vector<16x128xf32>
    %51 = tpu.matmul %49, %50, %cst_38 {dimension_numbers = #tpu.dot_dimension_numbers<[1], [0], [0], [1], [0, 0, 1, 1], [], []>} : vector<16x128xbf16>, vector<128x128xbf16>, vector<16x128xf32> -> vector<16x128xf32>
    %c0_39 = arith.constant 0 : index
    %c0_40 = arith.constant 0 : index
    %52 = vector.load %arg15[%c0_39, %c0_40] : memref<1x128xf32, #tpu.memory_space<vmem>>, vector<1x128xf32>
    %53 = vector.broadcast %52 : vector<1x128xf32> to vector<16x128xf32>
    %54 = arith.addf %51, %53 : vector<16x128xf32>
    %c0_41 = arith.constant 0 : index
    %c0_42 = arith.constant 0 : index
    %55 = vector.load %arg16[%c0_41, %c0_42] : memref<16x128xf32, #tpu.memory_space<vmem>>, vector<16x128xf32>
    tpu.vector_store %arg16[%c0_41, %c0_42], %54 {strides = array<i32>} : memref<16x128xf32, #tpu.memory_space<vmem>>, vector<16x128xf32>,
    return
  }
  func.func @transform_0(%arg0: i32) -> (i32, i32) {
    %c0_i32 = arith.constant 0 : i32
    %c0_i32_0 = arith.constant 0 : i32
    return %arg0, %c0_i32 : i32, i32
  }
  func.func @transform_1(%arg0: i32) -> (i32, i32) {
    %c0_i32 = arith.constant 0 : i32
    %c0_i32_0 = arith.constant 0 : i32
    %c0_i32_1 = arith.constant 0 : i32
    return %c0_i32, %c0_i32_0 : i32, i32
  }
  func.func @transform_2(%arg0: i32) -> (i32, i32) {
    %c0_i32 = arith.constant 0 : i32
    %c0_i32_0 = arith.constant 0 : i32
    %c0_i32_1 = arith.constant 0 : i32
    return %c0_i32, %c0_i32_0 : i32, i32
  }
  func.func @transform_3(%arg0: i32) -> (i32, i32) {
    %c0_i32 = arith.constant 0 : i32
    %c0_i32_0 = arith.constant 0 : i32
    %c0_i32_1 = arith.constant 0 : i32
    return %c0_i32, %c0_i32_0 : i32, i32
  }
  func.func @transform_4(%arg0: i32) -> (i32, i32) {
    %c0_i32 = arith.constant 0 : i32
    %c0_i32_0 = arith.constant 0 : i32
    %c0_i32_1 = arith.constant 0 : i32
    return %c0_i32, %c0_i32_0 : i32, i32
  }
  func.func @transform_5(%arg0: i32) -> (i32, i32) {
    %c0_i32 = arith.constant 0 : i32
    %c0_i32_0 = arith.constant 0 : i32
    %c0_i32_1 = arith.constant 0 : i32
    return %c0_i32, %c0_i32_0 : i32, i32
  }
  func.func @transform_6(%arg0: i32) -> (i32, i32) {
    %c0_i32 = arith.constant 0 : i32
    %c0_i32_0 = arith.constant 0 : i32
    %c0_i32_1 = arith.constant 0 : i32
    return %c0_i32, %c0_i32_0 : i32, i32
  }
  func.func @transform_7(%arg0: i32) -> (i32, i32) {
    %c0_i32 = arith.constant 0 : i32
    %c0_i32_0 = arith.constant 0 : i32
    %c0_i32_1 = arith.constant 0 : i32
    return %c0_i32, %c0_i32_0 : i32, i32
  }
  func.func @transform_8(%arg0: i32) -> (i32, i32) {
    %c0_i32 = arith.constant 0 : i32
    %c0_i32_0 = arith.constant 0 : i32
    %c0_i32_1 = arith.constant 0 : i32
    return %c0_i32, %c0_i32_0 : i32, i32
  }
  func.func @transform_9(%arg0: i32) -> (i32, i32) {
    %c0_i32 = arith.constant 0 : i32
    %c0_i32_0 = arith.constant 0 : i32
    %c0_i32_1 = arith.constant 0 : i32
    return %c0_i32, %c0_i32_0 : i32, i32
  }
  func.func @transform_10(%arg0: i32) -> (i32, i32) {
    %c0_i32 = arith.constant 0 : i32
    %c0_i32_0 = arith.constant 0 : i32
    %c0_i32_1 = arith.constant 0 : i32
    return %c0_i32, %c0_i32_0 : i32, i32
  }
  func.func @transform_11(%arg0: i32) -> (i32, i32) {
    %c0_i32 = arith.constant 0 : i32
    %c0_i32_0 = arith.constant 0 : i32
    %c0_i32_1 = arith.constant 0 : i32
    return %c0_i32, %c0_i32_0 : i32, i32
  }
  func.func @transform_12(%arg0: i32) -> (i32, i32) {
    %c0_i32 = arith.constant 0 : i32
    %c0_i32_0 = arith.constant 0 : i32
    %c0_i32_1 = arith.constant 0 : i32
    return %c0_i32, %c0_i32_0 : i32, i32
  }
  func.func @transform_13(%arg0: i32) -> (i32, i32) {
    %c0_i32 = arith.constant 0 : i32
    %c0_i32_0 = arith.constant 0 : i32
    %c0_i32_1 = arith.constant 0 : i32
    return %c0_i32, %c0_i32_0 : i32, i32
  }
  func.func @transform_14(%arg0: i32) -> (i32, i32) {
    %c0_i32 = arith.constant 0 : i32
    %c0_i32_0 = arith.constant 0 : i32
    %c0_i32_1 = arith.constant 0 : i32
    return %c0_i32, %c0_i32_0 : i32, i32
  }
  func.func @transform_15(%arg0: i32) -> (i32, i32) {
    %c0_i32 = arith.constant 0 : i32
    %c0_i32_0 = arith.constant 0 : i32
    return %arg0, %c0_i32 : i32, i32
  }
}

</mosaic_0001>

<llo_original>
// kernel: tpu_custom_call.1
$region0: #{tpu_custom_call.1}
  #allocation0 [shape = 'u32[]', space=smem, size = 0x4, offset = 0x4, fixed_abs, tag = 'smem constant byte address 0x4 - core index']
  #allocation1 [shape = 'u32[144,128]{1,0:T(1,128)}', space=vmem, size = 0x12000, scoped, tag = 'internal scratch']
  %s0 = inlined_call_operand.hbm [shape: f32[16,256], index: 0, kind: input, shape index: {}]
  %s1 = inlined_call_operand.hbm [shape: bf16[256,256], index: 1, kind: input, shape index: {}]
  %s2 = inlined_call_operand.vmem [shape: f32[1,256], index: 2, kind: input, shape index: {}]
  %s3 = inlined_call_operand.hbm [shape: bf16[256,256], index: 3, kind: input, shape index: {}]
  %s4 = inlined_call_operand.vmem [shape: f32[1,256], index: 4, kind: input, shape index: {}]
  %s5 = inlined_call_operand.hbm [shape: bf16[256,256], index: 5, kind: input, shape index: {}]
  %s6 = inlined_call_operand.vmem [shape: f32[1,256], index: 6, kind: input, shape index: {}]
  %s7 = inlined_call_operand.hbm [shape: bf16[256,128], index: 7, kind: input, shape index: {}]
  %s8 = inlined_call_operand.vmem [shape: f32[1,128], index: 8, kind: input, shape index: {}]
  %s9 = inlined_call_operand.hbm [shape: bf16[128,128], index: 9, kind: input, shape index: {}]
  %s10 = inlined_call_operand.vmem [shape: f32[1,128], index: 10, kind: input, shape index: {}]
  %s11 = inlined_call_operand.hbm [shape: bf16[128,128], index: 11, kind: input, shape index: {}]
  %s12 = inlined_call_operand.vmem [shape: f32[1,128], index: 12, kind: input, shape index: {}]
  %s13 = inlined_call_operand.hbm [shape: bf16[128,128], index: 13, kind: input, shape index: {}]
  %s14 = inlined_call_operand.vmem [shape: f32[1,128], index: 14, kind: input, shape index: {}]
  %s15 = inlined_call_operand.hbm [shape: f32[16,128], index: 15, kind: output, shape index: {}]
  %s16 = sld [smem:[#allocation0]]
  $region102: #{tpu_custom_call.1} parent=0
    _
  %s18 = ssub.s32 1, %s16
  %s19 = scalar_select 0, %s18, %s16
  $region1: #{tpu_custom_call.1} parent=0
    #allocation2 [shape = 'u8[16384]{0}', space=vmem, size = 0x4000, scoped, tag = 'input window, operand 0, single buffered']
    #allocation3 [shape = 's32[1]{0}', space=sflag, size = 0x4, scoped, tag = 'scoped memory for tpu_custom_call.1']
    #allocation4 [shape = 's32[1]{0}', space=sflag, size = 0x4, scoped, tag = 'scoped memory for tpu_custom_call.1']
    #allocation5 [shape = 'u8[131072]{0}', space=vmem, size = 0x20000, scoped, tag = 'input window, operand 1, single buffered']
    #allocation6 [shape = 's32[1]{0}', space=sflag, size = 0x4, scoped, tag = 'scoped memory for tpu_custom_call.1']
    #allocation7 [shape = 'u8[131072]{0}', space=vmem, size = 0x20000, scoped, tag = 'input window, operand 3, single buffered']
    #allocation8 [shape = 'u8[131072]{0}', space=vmem, size = 0x20000, scoped, tag = 'input window, operand 5, single buffered']
    #allocation9 [shape = 's32[1]{0}', space=sflag, size = 0x4, scoped, tag = 'scoped memory for tpu_custom_call.1']
    #allocation10 [shape = 'u8[65536]{0}', space=vmem, size = 0x10000, scoped, tag = 'input window, operand 7, single buffered']
    #allocation11 [shape = 'u8[32768]{0}', space=vmem, size = 0x8000, scoped, tag = 'input window, operand 9, single buffered']
    #allocation12 [shape = 's32[1]{0}', space=sflag, size = 0x4, scoped, tag = 'scoped memory for tpu_custom_call.1']
    #allocation13 [shape = 'u8[32768]{0}', space=vmem, size = 0x8000, scoped, tag = 'input window, operand 11, single buffered']
    #allocation14 [shape = 'u8[32768]{0}', space=vmem, size = 0x8000, scoped, tag = 'input window, operand 13, single buffered']
    #allocation15 [shape = 's32[1]{0}', space=sflag, size = 0x4, scoped, tag = 'scoped memory for tpu_custom_call.1']
    #allocation16 [shape = 'u8[8192]{0}', space=vmem, size = 0x2000, scoped, tag = 'output window, operand 0, single buffered']
    %20 = vsyncpa [#allocation3], 0
    %21 = vsyncpa [#allocation6], 0
    %22 = vsyncpa [#allocation9], 0
    %23 = vsyncpa [#allocation12], 0
    %24 = vsyncpa [#allocation15], 0
    %25 = vsyncpa [#allocation4], 0
    // Predicated region
    $region2: #{tpu_custom_call.1} parent=1 // pred_check
      _
    $region3: #{tpu_custom_call.1} parent=1 // pred_check_branch
      %27 = sbr.rel (0) target = $region5
    $region4: #{tpu_custom_call.1} parent=1 // pred_region
      %s29 = ssub.s32 512, 512
      %30 = vsyncadd [#allocation3], %s29
      %s31 = sshll.u32 [#allocation2], 4
      %s32 = int_to_ptr.vmem [resolvable:$true] %s31
      %37 = dma.hbm_to_vmem [thread:$0]  %s0, 512, %s32, [#allocation3], 256, 256, 16
    $region5: #{tpu_custom_call.1} parent=1 // pred_fallthru
      _
    // Predicated region
    $region6: #{tpu_custom_call.1} parent=1 // pred_check
      _
    $region7: #{tpu_custom_call.1} parent=1 // pred_check_branch
      %39 = sbr.rel (0) target = $region9
    $region8: #{tpu_custom_call.1} parent=1 // pred_region
      %s41 = ssub.s32 4096, 4096
      %42 = vsyncadd [#allocation6], %s41
      %s43 = sshll.u32 [#allocation5], 4
      %s44 = int_to_ptr.vmem [resolvable:$true] %s43
      %49 = dma.hbm_to_vmem [thread:$0]  %s1, 4096, %s44, [#allocation6], 128, 128, 8
    $region9: #{tpu_custom_call.1} parent=1 // pred_fallthru
      _
    // Predicated region
    $region10: #{tpu_custom_call.1} parent=1 // pred_check
      _
    $region11: #{tpu_custom_call.1} parent=1 // pred_check_branch
      %51 = sbr.rel (0) target = $region13
    $region12: #{tpu_custom_call.1} parent=1 // pred_region
      _
    $region13: #{tpu_custom_call.1} parent=1 // pred_fallthru
      _
    // Predicated region
    $region14: #{tpu_custom_call.1} parent=1 // pred_check
      _
    $region15: #{tpu_custom_call.1} parent=1 // pred_check_branch
      %53 = sbr.rel (0) target = $region17
    $region16: #{tpu_custom_call.1} parent=1 // pred_region
      %s55 = ssub.s32 4096, 4096
      %56 = vsyncadd [#allocation6], %s55
      %s57 = sshll.u32 [#allocation7], 4
      %s58 = int_to_ptr.vmem [resolvable:$true] %s57
      %63 = dma.hbm_to_vmem [thread:$0]  %s3, 4096, %s58, [#allocation6], 128, 128, 8
    $region17: #{tpu_custom_call.1} parent=1 // pred_fallthru
      _
    // Predicated region
    $region18: #{tpu_custom_call.1} parent=1 // pred_check
      _
    $region19: #{tpu_custom_call.1} parent=1 // pred_check_branch
      %65 = sbr.rel (0) target = $region21
    $region20: #{tpu_custom_call.1} parent=1 // pred_region
      _
    $region21: #{tpu_custom_call.1} parent=1 // pred_fallthru
      _
    // Predicated region
    $region22: #{tpu_custom_call.1} parent=1 // pred_check
      _
    $region23: #{tpu_custom_call.1} parent=1 // pred_check_branch
      %67 = sbr.rel (0) target = $region25
    $region24: #{tpu_custom_call.1} parent=1 // pred_region
      %s69 = ssub.s32 4096, 4096
      %70 = vsyncadd [#allocation9], %s69
      %s71 = sshll.u32 [#allocation8], 4
      %s72 = int_to_ptr.vmem [resolvable:$true] %s71
      %77 = dma.hbm_to_vmem [thread:$0]  %s5, 4096, %s72, [#allocation9], 128, 128, 8
    $region25: #{tpu_custom_call.1} parent=1 // pred_fallthru
      _
    // Predicated region
    $region26: #{tpu_custom_call.1} parent=1 // pred_check
      _
    $region27: #{tpu_custom_call.1} parent=1 // pred_check_branch
      %79 = sbr.rel (0) target = $region29
    $region28: #{tpu_custom_call.1} parent=1 // pred_region
      _
    $region29: #{tpu_custom_call.1} parent=1 // pred_fallthru
      _
    // Predicated region
    $region30: #{tpu_custom_call.1} parent=1 // pred_check
      _
    $region31: #{tpu_custom_call.1} parent=1 // pred_check_branch
      %81 = sbr.rel (0) target = $region33
    $region32: #{tpu_custom_call.1} parent=1 // pred_region
      %s83 = ssub.s32 2048, 2048
      %84 = vsyncadd [#allocation9], %s83
      %s85 = sshll.u32 [#allocation10], 4
      %s86 = int_to_ptr.vmem [resolvable:$true] %s85
      %91 = dma.hbm_to_vmem [thread:$0]  %s7, 2048, %s86, [#allocation9], 64, 64, 4
    $region33: #{tpu_custom_call.1} parent=1 // pred_fallthru
      _
    // Predicated region
    $region34: #{tpu_custom_call.1} parent=1 // pred_check
      _
    $region35: #{tpu_custom_call.1} parent=1 // pred_check_branch
      %93 = sbr.rel (0) target = $region37
    $region36: #{tpu_custom_call.1} parent=1 // pred_region
      _
    $region37: #{tpu_custom_call.1} parent=1 // pred_fallthru
      _
    // Predicated region
    $region38: #{tpu_custom_call.1} parent=1 // pred_check
      _
    $region39: #{tpu_custom_call.1} parent=1 // pred_check_branch
      %95 = sbr.rel (0) target = $region41
    $region40: #{tpu_custom_call.1} parent=1 // pred_region
      %s97 = ssub.s32 1024, 1024
      %98 = vsyncadd [#allocation12], %s97
      %s99 = sshll.u32 [#allocation11], 4
      %s100 = int_to_ptr.vmem [resolvable:$true] %s99
      %105 = dma.hbm_to_vmem [thread:$0]  %s9, 1024, %s100, [#allocation12], 64, 64, 4
    $region41: #{tpu_custom_call.1} parent=1 // pred_fallthru
      _
    // Predicated region
    $region42: #{tpu_custom_call.1} parent=1 // pred_check
      _
    $region43: #{tpu_custom_call.1} parent=1 // pred_check_branch
      %107 = sbr.rel (0) target = $region45
    $region44: #{tpu_custom_call.1} parent=1 // pred_region
      _
    $region45: #{tpu_custom_call.1} parent=1 // pred_fallthru
      _
    // Predicated region
    $region46: #{tpu_custom_call.1} parent=1 // pred_check
      _
    $region47: #{tpu_custom_call.1} parent=1 // pred_check_branch
      %109 = sbr.rel (0) target = $region49
    $region48: #{tpu_custom_call.1} parent=1 // pred_region
      %s111 = ssub.s32 1024, 1024
      %112 = vsyncadd [#allocation12], %s111
      %s113 = sshll.u32 [#allocation13], 4
      %s114 = int_to_ptr.vmem [resolvable:$true] %s113
      %119 = dma.hbm_to_vmem [thread:$0]  %s11, 1024, %s114, [#allocation12], 64, 64, 4
    $region49: #{tpu_custom_call.1} parent=1 // pred_fallthru
      _
    // Predicated region
    $region50: #{tpu_custom_call.1} parent=1 // pred_check
      _
    $region51: #{tpu_custom_call.1} parent=1 // pred_check_branch
      %121 = sbr.rel (0) target = $region53
    $region52: #{tpu_custom_call.1} parent=1 // pred_region
      _
    $region53: #{tpu_custom_call.1} parent=1 // pred_fallthru
      _
    // Predicated region
    $region54: #{tpu_custom_call.1} parent=1 // pred_check
      _
    $region55: #{tpu_custom_call.1} parent=1 // pred_check_branch
      %123 = sbr.rel (0) target = $region57
    $region56: #{tpu_custom_call.1} parent=1 // pred_region
      %s125 = ssub.s32 1024, 1024
      %126 = vsyncadd [#allocation15], %s125
      %s127 = sshll.u32 [#allocation14], 4
      %s128 = int_to_ptr.vmem [resolvable:$true] %s127
      %133 = dma.hbm_to_vmem [thread:$0]  %s13, 1024, %s128, [#allocation15], 64, 64, 4
    $region57: #{tpu_custom_call.1} parent=1 // pred_fallthru
      _
    // Predicated region
    $region58: #{tpu_custom_call.1} parent=1 // pred_check
      _
    $region59: #{tpu_custom_call.1} parent=1 // pred_check_branch
      %135 = sbr.rel (0) target = $region61
    $region60: #{tpu_custom_call.1} parent=1 // pred_region
      _
    $region61: #{tpu_custom_call.1} parent=1 // pred_fallthru
      _
    // Predicated region
    $region62: #{tpu_custom_call.1} parent=1 // pred_check
      _
    $region63: #{tpu_custom_call.1} parent=1 // pred_check_branch
      %137 = sbr.rel (0) target = $region65
    $region64: #{tpu_custom_call.1} parent=1 // pred_region
      %138 = dma.done [#allocation3], 512
    $region65: #{tpu_custom_call.1} parent=1 // pred_fallthru
      _
    // Predicated region
    $region66: #{tpu_custom_call.1} parent=1 // pred_check
      _
    $region67: #{tpu_custom_call.1} parent=1 // pred_check_branch
      %140 = sbr.rel (0) target = $region69
    $region68: #{tpu_custom_call.1} parent=1 // pred_region
      %141 = dma.done [#allocation6], 4096
    $region69: #{tpu_custom_call.1} parent=1 // pred_fallthru
      _
    // Predicated region
    $region70: #{tpu_custom_call.1} parent=1 // pred_check
      _
    $region71: #{tpu_custom_call.1} parent=1 // pred_check_branch
      %143 = sbr.rel (0) target = $region73
    $region72: #{tpu_custom_call.1} parent=1 // pred_region
      %144 = dma.done [#allocation6], 4096
    $region73: #{tpu_custom_call.1} parent=1 // pred_fallthru
      _
    // Predicated region
    $region74: #{tpu_custom_call.1} parent=1 // pred_check
      _
    $region75: #{tpu_custom_call.1} parent=1 // pred_check_branch
      %146 = sbr.rel (0) target = $region77
    $region76: #{tpu_custom_call.1} parent=1 // pred_region
      %147 = dma.done [#allocation9], 4096
    $region77: #{tpu_custom_call.1} parent=1 // pred_fallthru
      _
    // Predicated region
    $region78: #{tpu_custom_call.1} parent=1 // pred_check
      _
    $region79: #{tpu_custom_call.1} parent=1 // pred_check_branch
      %149 = sbr.rel (0) target = $region81
    $region80: #{tpu_custom_call.1} parent=1 // pred_region
      %150 = dma.done [#allocation9], 2048
    $region81: #{tpu_custom_call.1} parent=1 // pred_fallthru
      _
    // Predicated region
    $region82: #{tpu_custom_call.1} parent=1 // pred_check
      _
    $region83: #{tpu_custom_call.1} parent=1 // pred_check_branch
      %152 = sbr.rel (0) target = $region85
    $region84: #{tpu_custom_call.1} parent=1 // pred_region
      %153 = dma.done [#allocation12], 1024
    $region85: #{tpu_custom_call.1} parent=1 // pred_fallthru
      _
    // Predicated region
    $region86: #{tpu_custom_call.1} parent=1 // pred_check
      _
    $region87: #{tpu_custom_call.1} parent=1 // pred_check_branch
      %155 = sbr.rel (0) target = $region89
    $region88: #{tpu_custom_call.1} parent=1 // pred_region
      %156 = dma.done [#allocation12], 1024
    $region89: #{tpu_custom_call.1} parent=1 // pred_fallthru
      _
    // Predicated region
    $region90: #{tpu_custom_call.1} parent=1 // pred_check
      _
    $region91: #{tpu_custom_call.1} parent=1 // pred_check_branch
      %158 = sbr.rel (0) target = $region93
    $region92: #{tpu_custom_call.1} parent=1 // pred_region
      %159 = dma.done [#allocation15], 1024
    $region93: #{tpu_custom_call.1} parent=1 // pred_fallthru
      _
    %v161 = vld [vmem:[#allocation2] sm:$0xff]
    %v162 = vld [vmem:[#allocation2 + $0x8] sm:$0xff]
    %v163 = vld [vmem:[#allocation2 + $0x10] sm:$0xff]
    %v164 = vld [vmem:[#allocation2 + $0x18] sm:$0xff]
    %v165 = vpack.c.bf16 %v163, %v161
    %v166 = vpack.c.bf16 %v164, %v162
    %v167 = vld [vmem:[#allocation5] sm:$0xff]
    %v168 = vld [vmem:[#allocation5 + $0x8] sm:$0xff]
    %v169 = vld [vmem:[#allocation5 + $0x10] sm:$0xff]
    %v170 = vld [vmem:[#allocation5 + $0x18] sm:$0xff]
    %v171 = vld [vmem:[#allocation5 + $0x20] sm:$0xff]
    %v172 = vld [vmem:[#allocation5 + $0x28] sm:$0xff]
    %v173 = vld [vmem:[#allocation5 + $0x30] sm:$0xff]
    %v174 = vld [vmem:[#allocation5 + $0x38] sm:$0xff]
    %v175 = vld [vmem:[#allocation5 + $0x40] sm:$0xff]
    %v176 = vld [vmem:[#allocation5 + $0x48] sm:$0xff]
    %v177 = vld [vmem:[#allocation5 + $0x50] sm:$0xff]
    %v178 = vld [vmem:[#allocation5 + $0x58] sm:$0xff]
    %v179 = vld [vmem:[#allocation5 + $0x60] sm:$0xff]
    %v180 = vld [vmem:[#allocation5 + $0x68] sm:$0xff]
    %v181 = vld [vmem:[#allocation5 + $0x70] sm:$0xff]
    %v182 = vld [vmem:[#allocation5 + $0x78] sm:$0xff]
    %v183 = vld [vmem:[#allocation5 + $0x80] sm:$0xff]
    %v184 = vld [vmem:[#allocation5 + $0x88] sm:$0xff]
    %v185 = vld [vmem:[#allocation5 + $0x90] sm:$0xff]
    %v186 = vld [vmem:[#allocation5 + $0x98] sm:$0xff]
    %v187 = vld [vmem:[#allocation5 + $0xa0] sm:$0xff]
    %v188 = vld [vmem:[#allocation5 + $0xa8] sm:$0xff]
    %v189 = vld [vmem:[#allocation5 + $0xb0] sm:$0xff]
    %v190 = vld [vmem:[#allocation5 + $0xb8] sm:$0xff]
    %v191 = vld [vmem:[#allocation5 + $0xc0] sm:$0xff]
    %v192 = vld [vmem:[#allocation5 + $0xc8] sm:$0xff]
    %v193 = vld [vmem:[#allocation5 + $0xd0] sm:$0xff]
    %v194 = vld [vmem:[#allocation5 + $0xd8] sm:$0xff]
    %v195 = vld [vmem:[#allocation5 + $0xe0] sm:$0xff]
    %v196 = vld [vmem:[#allocation5 + $0xe8] sm:$0xff]
    %v197 = vld [vmem:[#allocation5 + $0xf0] sm:$0xff]
    %v198 = vld [vmem:[#allocation5 + $0xf8] sm:$0xff]
    %v199 = vld [vmem:[%s2] sm:$0x3]
    %v201 = vlaneseq
    %v202 = vshrl.u32 %v201, 7
    %v203 = vsub.s32 0, %v202
    %v204 = vrot.slane %v199, %v203
    %v205 = vlaneseq
    %v206 = vshrl.u32 %v205, 7
    %v207 = vsub.s32 1, %v206
    %v208 = vrot.slane %v199, %v207
    %v243 = vunpack.c.l.b16 %v167
    %v244 = vunpack.c.h.b16 %v167
    %v245 = vunpack.c.l.b16 %v168
    %v246 = vunpack.c.h.b16 %v168
    %v247 = vunpack.c.l.b16 %v169
    %v248 = vunpack.c.h.b16 %v169
    %v249 = vunpack.c.l.b16 %v170
    %v250 = vunpack.c.h.b16 %v170
    %v251 = vunpack.c.l.b16 %v171
    %v252 = vunpack.c.h.b16 %v171
    %v253 = vunpack.c.l.b16 %v172
    %v254 = vunpack.c.h.b16 %v172
    %v255 = vunpack.c.l.b16 %v173
    %v256 = vunpack.c.h.b16 %v173
    %v257 = vunpack.c.l.b16 %v174
    %v258 = vunpack.c.h.b16 %v174
    %v259 = vunpack.c.l.b16 %v175
    %v260 = vunpack.c.h.b16 %v175
    %v261 = vunpack.c.l.b16 %v176
    %v262 = vunpack.c.h.b16 %v176
    %v263 = vunpack.c.l.b16 %v177
    %v264 = vunpack.c.h.b16 %v177
    %v265 = vunpack.c.l.b16 %v178
    %v266 = vunpack.c.h.b16 %v178
    %v267 = vunpack.c.l.b16 %v179
    %v268 = vunpack.c.h.b16 %v179
    %v269 = vunpack.c.l.b16 %v180
    %v270 = vunpack.c.h.b16 %v180
    %v271 = vunpack.c.l.b16 %v181
    %v272 = vunpack.c.h.b16 %v181
    %v273 = vunpack.c.l.b16 %v182
    %v274 = vunpack.c.h.b16 %v182
    %v275 = vunpack.c.l.b16 %v183
    %v276 = vunpack.c.h.b16 %v183
    %v277 = vunpack.c.l.b16 %v184
    %v278 = vunpack.c.h.b16 %v184
    %v279 = vunpack.c.l.b16 %v185
    %v280 = vunpack.c.h.b16 %v185
    %v281 = vunpack.c.l.b16 %v186
    %v282 = vunpack.c.h.b16 %v186
    %v283 = vunpack.c.l.b16 %v187
    %v284 = vunpack.c.h.b16 %v187
    %v285 = vunpack.c.l.b16 %v188
    %v286 = vunpack.c.h.b16 %v188
    %v287 = vunpack.c.l.b16 %v189
    %v288 = vunpack.c.h.b16 %v189
    %v289 = vunpack.c.l.b16 %v190
    %v290 = vunpack.c.h.b16 %v190
    %v291 = vunpack.c.l.b16 %v191
    %v292 = vunpack.c.h.b16 %v191
    %v293 = vunpack.c.l.b16 %v192
    %v294 = vunpack.c.h.b16 %v192
    %v295 = vunpack.c.l.b16 %v193
    %v296 = vunpack.c.h.b16 %v193
    %v297 = vunpack.c.l.b16 %v194
    %v298 = vunpack.c.h.b16 %v194
    %v299 = vunpack.c.l.b16 %v195
    %v300 = vunpack.c.h.b16 %v195
    %v301 = vunpack.c.l.b16 %v196
    %v302 = vunpack.c.h.b16 %v196
    %v303 = vunpack.c.l.b16 %v197
    %v304 = vunpack.c.h.b16 %v197
    %v305 = vunpack.c.l.b16 %v198
    %v306 = vunpack.c.h.b16 %v198
    %v307 = vpack.c.b16 %v245, %v243
    %v308 = vpack.c.b16 %v246, %v244
    %v309 = vpack.c.b16 %v249, %v247
    %v310 = vpack.c.b16 %v250, %v248
    %v311 = vpack.c.b16 %v253, %v251
    %v312 = vpack.c.b16 %v254, %v252
    %v313 = vpack.c.b16 %v257, %v255
    %v314 = vpack.c.b16 %v258, %v256
    %v315 = vpack.c.b16 %v261, %v259
    %v316 = vpack.c.b16 %v262, %v260
    %v317 = vpack.c.b16 %v265, %v263
    %v318 = vpack.c.b16 %v266, %v264
    %v319 = vpack.c.b16 %v269, %v267
    %v320 = vpack.c.b16 %v270, %v268
    %v321 = vpack.c.b16 %v273, %v271
    %v322 = vpack.c.b16 %v274, %v272
    %v323 = vpack.c.b16 %v277, %v275
    %v324 = vpack.c.b16 %v278, %v276
    %v325 = vpack.c.b16 %v281, %v279
    %v326 = vpack.c.b16 %v282, %v280
    %v327 = vpack.c.b16 %v285, %v283
    %v328 = vpack.c.b16 %v286, %v284
    %v329 = vpack.c.b16 %v289, %v287
    %v330 = vpack.c.b16 %v290, %v288
    %v331 = vpack.c.b16 %v293, %v291
    %v332 = vpack.c.b16 %v294, %v292
    %v333 = vpack.c.b16 %v297, %v295
    %v334 = vpack.c.b16 %v298, %v296
    %v335 = vpack.c.b16 %v301, %v299
    %v336 = vpack.c.b16 %v302, %v300
    %v337 = vpack.c.b16 %v305, %v303
    %v338 = vpack.c.b16 %v306, %v304
    %371 = vmatprep.subr.bf16.mxu0 %v308
    %372 = vmatpush1.bf16.msra.mxu0 %v307
    %373 = vmatprep.subr.bf16.mxu0 %v310
    %374 = vmatpush1.bf16.msra.mxu0 %v309
    %375 = vmatprep.subr.bf16.mxu0 %v312
    %376 = vmatpush1.bf16.msra.mxu0 %v311
    %377 = vmatprep.subr.bf16.mxu0 %v314
    %378 = vmatpush1.bf16.msra.mxu0 %v313
    %379 = vmatprep.subr.bf16.mxu0 %v316
    %380 = vmatpush1.bf16.msra.mxu0 %v315
    %381 = vmatprep.subr.bf16.mxu0 %v318
    %382 = vmatpush1.bf16.msra.mxu0 %v317
    %383 = vmatprep.subr.bf16.mxu0 %v320
    %384 = vmatpush1.bf16.msra.mxu0 %v319
    %385 = vmatprep.subr.bf16.mxu0 %v322
    %386 = vmatpush1.bf16.msra.mxu0 %v321
    %387 = vmatprep.subr.bf16.mxu0 %v324
    %388 = vmatpush1.bf16.msra.mxu0 %v323
    %389 = vmatprep.subr.bf16.mxu0 %v326
    %390 = vmatpush1.bf16.msra.mxu0 %v325
    %391 = vmatprep.subr.bf16.mxu0 %v328
    %392 = vmatpush1.bf16.msra.mxu0 %v327
    %393 = vmatprep.subr.bf16.mxu0 %v330
    %394 = vmatpush1.bf16.msra.mxu0 %v329
    %395 = vmatprep.subr.bf16.mxu0 %v332
    %396 = vmatpush1.bf16.msra.mxu0 %v331
    %397 = vmatprep.subr.bf16.mxu0 %v334
    %398 = vmatpush1.bf16.msra.mxu0 %v333
    %399 = vmatprep.subr.bf16.mxu0 %v336
    %400 = vmatpush1.bf16.msra.mxu0 %v335
    %401 = vmatprep.subr.bf16.mxu0 %v338
    %402 = vmatpush1.bf16.msra.mxu0 %v337
    %403 = vmatprep.mubr.bf16.mxu0 %v166
    %404 = vmatmul.mubr.bf16.gmra.mrb[0].mxu0 %v165
    %v405 = vpop.f32.mrb[0].mxu0
    %v406 = vadd.f32 %v204, %v405
    %v407 = vpop.f32.mrb[0].mxu0
    %v408 = vadd.f32 %v208, %v407
    %v409 = vpop.f32.mrb[0].mxu0
    %v410 = vadd.f32 %v204, %v409
    %v411 = vpop.f32.mrb[0].mxu0
    %v412 = vadd.f32 %v208, %v411
    %413 = vdwg.mxu0
    %v414 = vmax.f32 %v406, 0.0
    %v415 = vmax.f32 %v408, 0.0
    %v416 = vmax.f32 %v410, 0.0
    %v417 = vmax.f32 %v412, 0.0
    %v418 = vpack.c.bf16 %v416, %v414
    %v419 = vpack.c.bf16 %v417, %v415
    %v420 = vld [vmem:[#allocation7] sm:$0xff]
    %v421 = vld [vmem:[#allocation7 + $0x8] sm:$0xff]
    %v422 = vld [vmem:[#allocation7 + $0x10] sm:$0xff]
    %v423 = vld [vmem:[#allocation7 + $0x18] sm:$0xff]
    %v424 = vld [vmem:[#allocation7 + $0x20] sm:$0xff]
    %v425 = vld [vmem:[#allocation7 + $0x28] sm:$0xff]
    %v426 = vld [vmem:[#allocation7 + $0x30] sm:$0xff]
    %v427 = vld [vmem:[#allocation7 + $0x38] sm:$0xff]
    %v428 = vld [vmem:[#allocation7 + $0x40] sm:$0xff]
    %v429 = vld [vmem:[#allocation7 + $0x48] sm:$0xff]
    %v430 = vld [vmem:[#allocation7 + $0x50] sm:$0xff]
    %v431 = vld [vmem:[#allocation7 + $0x58] sm:$0xff]
    %v432 = vld [vmem:[#allocation7 + $0x60] sm:$0xff]
    %v433 = vld [vmem:[#allocation7 + $0x68] sm:$0xff]
    %v434 = vld [vmem:[#allocation7 + $0x70] sm:$0xff]
    %v435 = vld [vmem:[#allocation7 + $0x78] sm:$0xff]
    %v436 = vld [vmem:[#allocation7 + $0x80] sm:$0xff]
    %v437 = vld [vmem:[#allocation7 + $0x88] sm:$0xff]
    %v438 = vld [vmem:[#allocation7 + $0x90] sm:$0xff]
    %v439 = vld [vmem:[#allocation7 + $0x98] sm:$0xff]
    %v440 = vld [vmem:[#allocation7 + $0xa0] sm:$0xff]
    %v441 = vld [vmem:[#allocation7 + $0xa8] sm:$0xff]
    %v442 = vld [vmem:[#allocation7 + $0xb0] sm:$0xff]
    %v443 = vld [vmem:[#allocation7 + $0xb8] sm:$0xff]
    %v444 = vld [vmem:[#allocation7 + $0xc0] sm:$0xff]
    %v445 = vld [vmem:[#allocation7 + $0xc8] sm:$0xff]
    %v446 = vld [vmem:[#allocation7 + $0xd0] sm:$0xff]
    %v447 = vld [vmem:[#allocation7 + $0xd8] sm:$0xff]
    %v448 = vld [vmem:[#allocation7 + $0xe0] sm:$0xff]
    %v449 = vld [vmem:[#allocation7 + $0xe8] sm:$0xff]
    %v450 = vld [vmem:[#allocation7 + $0xf0] sm:$0xff]
    %v451 = vld [vmem:[#allocation7 + $0xf8] sm:$0xff]
    %v452 = vld [vmem:[%s4] sm:$0x3]
    %v454 = vlaneseq
    %v455 = vshrl.u32 %v454, 7
    %v456 = vsub.s32 0, %v455
    %v457 = vrot.slane %v452, %v456
    %v458 = vlaneseq
    %v459 = vshrl.u32 %v458, 7
    %v460 = vsub.s32 1, %v459
    %v461 = vrot.slane %v452, %v460
    %v496 = vunpack.c.l.b16 %v420
    %v497 = vunpack.c.h.b16 %v420
    %v498 = vunpack.c.l.b16 %v421
    %v499 = vunpack.c.h.b16 %v421
    %v500 = vunpack.c.l.b16 %v422
    %v501 = vunpack.c.h.b16 %v422
    %v502 = vunpack.c.l.b16 %v423
    %v503 = vunpack.c.h.b16 %v423
    %v504 = vunpack.c.l.b16 %v424
    %v505 = vunpack.c.h.b16 %v424
    %v506 = vunpack.c.l.b16 %v425
    %v507 = vunpack.c.h.b16 %v425
    %v508 = vunpack.c.l.b16 %v426
    %v509 = vunpack.c.h.b16 %v426
    %v510 = vunpack.c.l.b16 %v427
    %v511 = vunpack.c.h.b16 %v427
    %v512 = vunpack.c.l.b16 %v428
    %v513 = vunpack.c.h.b16 %v428
    %v514 = vunpack.c.l.b16 %v429
    %v515 = vunpack.c.h.b16 %v429
    %v516 = vunpack.c.l.b16 %v430
    %v517 = vunpack.c.h.b16 %v430
    %v518 = vunpack.c.l.b16 %v431
    %v519 = vunpack.c.h.b16 %v431
    %v520 = vunpack.c.l.b16 %v432
    %v521 = vunpack.c.h.b16 %v432
    %v522 = vunpack.c.l.b16 %v433
    %v523 = vunpack.c.h.b16 %v433
    %v524 = vunpack.c.l.b16 %v434
    %v525 = vunpack.c.h.b16 %v434
    %v526 = vunpack.c.l.b16 %v435
    %v527 = vunpack.c.h.b16 %v435
    %v528 = vunpack.c.l.b16 %v436
    %v529 = vunpack.c.h.b16 %v436
    %v530 = vunpack.c.l.b16 %v437
    %v531 = vunpack.c.h.b16 %v437
    %v532 = vunpack.c.l.b16 %v438
    %v533 = vunpack.c.h.b16 %v438
    %v534 = vunpack.c.l.b16 %v439
    %v535 = vunpack.c.h.b16 %v439
    %v536 = vunpack.c.l.b16 %v440
    %v537 = vunpack.c.h.b16 %v440
    %v538 = vunpack.c.l.b16 %v441
    %v539 = vunpack.c.h.b16 %v441
    %v540 = vunpack.c.l.b16 %v442
    %v541 = vunpack.c.h.b16 %v442
    %v542 = vunpack.c.l.b16 %v443
    %v543 = vunpack.c.h.b16 %v443
    %v544 = vunpack.c.l.b16 %v444
    %v545 = vunpack.c.h.b16 %v444
    %v546 = vunpack.c.l.b16 %v445
    %v547 = vunpack.c.h.b16 %v445
    %v548 = vunpack.c.l.b16 %v446
    %v549 = vunpack.c.h.b16 %v446
    %v550 = vunpack.c.l.b16 %v447
    %v551 = vunpack.c.h.b16 %v447
    %v552 = vunpack.c.l.b16 %v448
    %v553 = vunpack.c.h.b16 %v448
    %v554 = vunpack.c.l.b16 %v449
    %v555 = vunpack.c.h.b16 %v449
    %v556 = vunpack.c.l.b16 %v450
    %v557 = vunpack.c.h.b16 %v450
    %v558 = vunpack.c.l.b16 %v451
    %v559 = vunpack.c.h.b16 %v451
    %v560 = vpack.c.b16 %v498, %v496
    %v561 = vpack.c.b16 %v499, %v497
    %v562 = vpack.c.b16 %v502, %v500
    %v563 = vpack.c.b16 %v503, %v501
    %v564 = vpack.c.b16 %v506, %v504
    %v565 = vpack.c.b16 %v507, %v505
    %v566 = vpack.c.b16 %v510, %v508
    %v567 = vpack.c.b16 %v511, %v509
    %v568 = vpack.c.b16 %v514, %v512
    %v569 = vpack.c.b16 %v515, %v513
    %v570 = vpack.c.b16 %v518, %v516
    %v571 = vpack.c.b16 %v519, %v517
    %v572 = vpack.c.b16 %v522, %v520
    %v573 = vpack.c.b16 %v523, %v521
    %v574 = vpack.c.b16 %v526, %v524
    %v575 = vpack.c.b16 %v527, %v525
    %v576 = vpack.c.b16 %v530, %v528
    %v577 = vpack.c.b16 %v531, %v529
    %v578 = vpack.c.b16 %v534, %v532
    %v579 = vpack.c.b16 %v535, %v533
    %v580 = vpack.c.b16 %v538, %v536
    %v581 = vpack.c.b16 %v539, %v537
    %v582 = vpack.c.b16 %v542, %v540
    %v583 = vpack.c.b16 %v543, %v541
    %v584 = vpack.c.b16 %v546, %v544
    %v585 = vpack.c.b16 %v547, %v545
    %v586 = vpack.c.b16 %v550, %v548
    %v587 = vpack.c.b16 %v551, %v549
    %v588 = vpack.c.b16 %v554, %v552
    %v589 = vpack.c.b16 %v555, %v553
    %v590 = vpack.c.b16 %v558, %v556
    %v591 = vpack.c.b16 %v559, %v557
    %624 = vmatprep.subr.bf16.mxu0 %v561
    %625 = vmatpush1.bf16.msra.mxu0 %v560
    %626 = vmatprep.subr.bf16.mxu0 %v563
    %627 = vmatpush1.bf16.msra.mxu0 %v562
    %628 = vmatprep.subr.bf16.mxu0 %v565
    %629 = vmatpush1.bf16.msra.mxu0 %v564
    %630 = vmatprep.subr.bf16.mxu0 %v567
    %631 = vmatpush1.bf16.msra.mxu0 %v566
    %632 = vmatprep.subr.bf16.mxu0 %v569
    %633 = vmatpush1.bf16.msra.mxu0 %v568
    %634 = vmatprep.subr.bf16.mxu0 %v571
    %635 = vmatpush1.bf16.msra.mxu0 %v570
    %636 = vmatprep.subr.bf16.mxu0 %v573
    %637 = vmatpush1.bf16.msra.mxu0 %v572
    %638 = vmatprep.subr.bf16.mxu0 %v575
    %639 = vmatpush1.bf16.msra.mxu0 %v574
    %640 = vmatprep.subr.bf16.mxu0 %v577
    %641 = vmatpush1.bf16.msra.mxu0 %v576
    %642 = vmatprep.subr.bf16.mxu0 %v579
    %643 = vmatpush1.bf16.msra.mxu0 %v578
    %644 = vmatprep.subr.bf16.mxu0 %v581
    %645 = vmatpush1.bf16.msra.mxu0 %v580
    %646 = vmatprep.subr.bf16.mxu0 %v583
    %647 = vmatpush1.bf16.msra.mxu0 %v582
    %648 = vmatprep.subr.bf16.mxu0 %v585
    %649 = vmatpush1.bf16.msra.mxu0 %v584
    %650 = vmatprep.subr.bf16.mxu0 %v587
    %651 = vmatpush1.bf16.msra.mxu0 %v586
    %652 = vmatprep.subr.bf16.mxu0 %v589
    %653 = vmatpush1.bf16.msra.mxu0 %v588
    %654 = vmatprep.subr.bf16.mxu0 %v591
    %655 = vmatpush1.bf16.msra.mxu0 %v590
    %656 = vmatprep.mubr.bf16.mxu0 %v419
    %657 = vmatmul.mubr.bf16.gmra.mrb[0].mxu0 %v418
    %v658 = vpop.f32.mrb[0].mxu0
    %v659 = vadd.f32 %v457, %v658
    %v660 = vpop.f32.mrb[0].mxu0
    %v661 = vadd.f32 %v461, %v660
    %v662 = vpop.f32.mrb[0].mxu0
    %v663 = vadd.f32 %v457, %v662
    %v664 = vpop.f32.mrb[0].mxu0
    %v665 = vadd.f32 %v461, %v664
    %666 = vdwg.mxu0
    %v667 = vmax.f32 %v659, 0.0
    %v668 = vmax.f32 %v661, 0.0
    %v669 = vmax.f32 %v663, 0.0
    %v670 = vmax.f32 %v665, 0.0
    %v671 = vpack.c.bf16 %v669, %v667
    %v672 = vpack.c.bf16 %v670, %v668
    %v673 = vld [vmem:[#allocation8] sm:$0xff]
    %v674 = vld [vmem:[#allocation8 + $0x8] sm:$0xff]
    %v675 = vld [vmem:[#allocation8 + $0x10] sm:$0xff]
    %v676 = vld [vmem:[#allocation8 + $0x18] sm:$0xff]
    %v677 = vld [vmem:[#allocation8 + $0x20] sm:$0xff]
    %v678 = vld [vmem:[#allocation8 + $0x28] sm:$0xff]
    %v679 = vld [vmem:[#allocation8 + $0x30] sm:$0xff]
    %v680 = vld [vmem:[#allocation8 + $0x38] sm:$0xff]
    %v681 = vld [vmem:[#allocation8 + $0x40] sm:$0xff]
    %v682 = vld [vmem:[#allocation8 + $0x48] sm:$0xff]
    %v683 = vld [vmem:[#allocation8 + $0x50] sm:$0xff]
    %v684 = vld [vmem:[#allocation8 + $0x58] sm:$0xff]
    %v685 = vld [vmem:[#allocation8 + $0x60] sm:$0xff]
    %v686 = vld [vmem:[#allocation8 + $0x68] sm:$0xff]
    %v687 = vld [vmem:[#allocation8 + $0x70] sm:$0xff]
    %v688 = vld [vmem:[#allocation8 + $0x78] sm:$0xff]
    %v689 = vld [vmem:[#allocation8 + $0x80] sm:$0xff]
    %v690 = vld [vmem:[#allocation8 + $0x88] sm:$0xff]
    %v691 = vld [vmem:[#allocation8 + $0x90] sm:$0xff]
    %v692 = vld [vmem:[#allocation8 + $0x98] sm:$0xff]
    %v693 = vld [vmem:[#allocation8 + $0xa0] sm:$0xff]
    %v694 = vld [vmem:[#allocation8 + $0xa8] sm:$0xff]
    %v695 = vld [vmem:[#allocation8 + $0xb0] sm:$0xff]
    %v696 = vld [vmem:[#allocation8 + $0xb8] sm:$0xff]
    %v697 = vld [vmem:[#allocation8 + $0xc0] sm:$0xff]
    %v698 = vld [vmem:[#allocation8 + $0xc8] sm:$0xff]
    %v699 = vld [vmem:[#allocation8 + $0xd0] sm:$0xff]
    %v700 = vld [vmem:[#allocation8 + $0xd8] sm:$0xff]
    %v701 = vld [vmem:[#allocation8 + $0xe0] sm:$0xff]
    %v702 = vld [vmem:[#allocation8 + $0xe8] sm:$0xff]
    %v703 = vld [vmem:[#allocation8 + $0xf0] sm:$0xff]
    %v704 = vld [vmem:[#allocation8 + $0xf8] sm:$0xff]
    %v705 = vld [vmem:[%s6] sm:$0x3]
    %v707 = vlaneseq
    %v708 = vshrl.u32 %v707, 7
    %v709 = vsub.s32 0, %v708
    %v710 = vrot.slane %v705, %v709
    %v711 = vlaneseq
    %v712 = vshrl.u32 %v711, 7
    %v713 = vsub.s32 1, %v712
    %v714 = vrot.slane %v705, %v713
    %v749 = vunpack.c.l.b16 %v673
    %v750 = vunpack.c.h.b16 %v673
    %v751 = vunpack.c.l.b16 %v674
    %v752 = vunpack.c.h.b16 %v674
    %v753 = vunpack.c.l.b16 %v675
    %v754 = vunpack.c.h.b16 %v675
    %v755 = vunpack.c.l.b16 %v676
    %v756 = vunpack.c.h.b16 %v676
    %v757 = vunpack.c.l.b16 %v677
    %v758 = vunpack.c.h.b16 %v677
    %v759 = vunpack.c.l.b16 %v678
    %v760 = vunpack.c.h.b16 %v678
    %v761 = vunpack.c.l.b16 %v679
    %v762 = vunpack.c.h.b16 %v679
    %v763 = vunpack.c.l.b16 %v680
    %v764 = vunpack.c.h.b16 %v680
    %v765 = vunpack.c.l.b16 %v681
    %v766 = vunpack.c.h.b16 %v681
    %v767 = vunpack.c.l.b16 %v682
    %v768 = vunpack.c.h.b16 %v682
    %v769 = vunpack.c.l.b16 %v683
    %v770 = vunpack.c.h.b16 %v683
    %v771 = vunpack.c.l.b16 %v684
    %v772 = vunpack.c.h.b16 %v684
    %v773 = vunpack.c.l.b16 %v685
    %v774 = vunpack.c.h.b16 %v685
    %v775 = vunpack.c.l.b16 %v686
    %v776 = vunpack.c.h.b16 %v686
    %v777 = vunpack.c.l.b16 %v687
    %v778 = vunpack.c.h.b16 %v687
    %v779 = vunpack.c.l.b16 %v688
    %v780 = vunpack.c.h.b16 %v688
    %v781 = vunpack.c.l.b16 %v689
    %v782 = vunpack.c.h.b16 %v689
    %v783 = vunpack.c.l.b16 %v690
    %v784 = vunpack.c.h.b16 %v690
    %v785 = vunpack.c.l.b16 %v691
    %v786 = vunpack.c.h.b16 %v691
    %v787 = vunpack.c.l.b16 %v692
    %v788 = vunpack.c.h.b16 %v692
    %v789 = vunpack.c.l.b16 %v693
    %v790 = vunpack.c.h.b16 %v693
    %v791 = vunpack.c.l.b16 %v694
    %v792 = vunpack.c.h.b16 %v694
    %v793 = vunpack.c.l.b16 %v695
    %v794 = vunpack.c.h.b16 %v695
    %v795 = vunpack.c.l.b16 %v696
    %v796 = vunpack.c.h.b16 %v696
    %v797 = vunpack.c.l.b16 %v697
    %v798 = vunpack.c.h.b16 %v697
    %v799 = vunpack.c.l.b16 %v698
    %v800 = vunpack.c.h.b16 %v698
    %v801 = vunpack.c.l.b16 %v699
    %v802 = vunpack.c.h.b16 %v699
    %v803 = vunpack.c.l.b16 %v700
    %v804 = vunpack.c.h.b16 %v700
    %v805 = vunpack.c.l.b16 %v701
    %v806 = vunpack.c.h.b16 %v701
    %v807 = vunpack.c.l.b16 %v702
    %v808 = vunpack.c.h.b16 %v702
    %v809 = vunpack.c.l.b16 %v703
    %v810 = vunpack.c.h.b16 %v703
    %v811 = vunpack.c.l.b16 %v704
    %v812 = vunpack.c.h.b16 %v704
    %v813 = vpack.c.b16 %v751, %v749
    %v814 = vpack.c.b16 %v752, %v750
    %v815 = vpack.c.b16 %v755, %v753
    %v816 = vpack.c.b16 %v756, %v754
    %v817 = vpack.c.b16 %v759, %v757
    %v818 = vpack.c.b16 %v760, %v758
    %v819 = vpack.c.b16 %v763, %v761
    %v820 = vpack.c.b16 %v764, %v762
    %v821 = vpack.c.b16 %v767, %v765
    %v822 = vpack.c.b16 %v768, %v766
    %v823 = vpack.c.b16 %v771, %v769
    %v824 = vpack.c.b16 %v772, %v770
    %v825 = vpack.c.b16 %v775, %v773
    %v826 = vpack.c.b16 %v776, %v774
    %v827 = vpack.c.b16 %v779, %v777
    %v828 = vpack.c.b16 %v780, %v778
    %v829 = vpack.c.b16 %v783, %v781
    %v830 = vpack.c.b16 %v784, %v782
    %v831 = vpack.c.b16 %v787, %v785
    %v832 = vpack.c.b16 %v788, %v786
    %v833 = vpack.c.b16 %v791, %v789
    %v834 = vpack.c.b16 %v792, %v790
    %v835 = vpack.c.b16 %v795, %v793
    %v836 = vpack.c.b16 %v796, %v794
    %v837 = vpack.c.b16 %v799, %v797
    %v838 = vpack.c.b16 %v800, %v798
    %v839 = vpack.c.b16 %v803, %v801
    %v840 = vpack.c.b16 %v804, %v802
    %v841 = vpack.c.b16 %v807, %v805
    %v842 = vpack.c.b16 %v808, %v806
    %v843 = vpack.c.b16 %v811, %v809
    %v844 = vpack.c.b16 %v812, %v810
    %877 = vmatprep.subr.bf16.mxu0 %v814
    %878 = vmatpush1.bf16.msra.mxu0 %v813
    %879 = vmatprep.subr.bf16.mxu0 %v816
    %880 = vmatpush1.bf16.msra.mxu0 %v815
    %881 = vmatprep.subr.bf16.mxu0 %v818
    %882 = vmatpush1.bf16.msra.mxu0 %v817
    %883 = vmatprep.subr.bf16.mxu0 %v820
    %884 = vmatpush1.bf16.msra.mxu0 %v819
    %885 = vmatprep.subr.bf16.mxu0 %v822
    %886 = vmatpush1.bf16.msra.mxu0 %v821
    %887 = vmatprep.subr.bf16.mxu0 %v824
    %888 = vmatpush1.bf16.msra.mxu0 %v823
    %889 = vmatprep.subr.bf16.mxu0 %v826
    %890 = vmatpush1.bf16.msra.mxu0 %v825
    %891 = vmatprep.subr.bf16.mxu0 %v828
    %892 = vmatpush1.bf16.msra.mxu0 %v827
    %893 = vmatprep.subr.bf16.mxu0 %v830
    %894 = vmatpush1.bf16.msra.mxu0 %v829
    %895 = vmatprep.subr.bf16.mxu0 %v832
    %896 = vmatpush1.bf16.msra.mxu0 %v831
    %897 = vmatprep.subr.bf16.mxu0 %v834
    %898 = vmatpush1.bf16.msra.mxu0 %v833
    %899 = vmatprep.subr.bf16.mxu0 %v836
    %900 = vmatpush1.bf16.msra.mxu0 %v835
    %901 = vmatprep.subr.bf16.mxu0 %v838
    %902 = vmatpush1.bf16.msra.mxu0 %v837
    %903 = vmatprep.subr.bf16.mxu0 %v840
    %904 = vmatpush1.bf16.msra.mxu0 %v839
    %905 = vmatprep.subr.bf16.mxu0 %v842
    %906 = vmatpush1.bf16.msra.mxu0 %v841
    %907 = vmatprep.subr.bf16.mxu0 %v844
    %908 = vmatpush1.bf16.msra.mxu0 %v843
    %909 = vmatprep.mubr.bf16.mxu0 %v672
    %910 = vmatmul.mubr.bf16.gmra.mrb[0].mxu0 %v671
    %v911 = vpop.f32.mrb[0].mxu0
    %v912 = vadd.f32 %v710, %v911
    %v913 = vpop.f32.mrb[0].mxu0
    %v914 = vadd.f32 %v714, %v913
    %v915 = vpop.f32.mrb[0].mxu0
    %v916 = vadd.f32 %v710, %v915
    %v917 = vpop.f32.mrb[0].mxu0
    %v918 = vadd.f32 %v714, %v917
    %919 = vdwg.mxu0
    %v920 = vmax.f32 %v912, 0.0
    %v921 = vmax.f32 %v914, 0.0
    %v922 = vmax.f32 %v916, 0.0
    %v923 = vmax.f32 %v918, 0.0
    %v924 = vpack.c.bf16 %v922, %v920
    %v925 = vpack.c.bf16 %v923, %v921
    %v926 = vld [vmem:[#allocation10] sm:$0xf]
    %v927 = vld [vmem:[#allocation10 + $0x4] sm:$0xf]
    %v928 = vld [vmem:[#allocation10 + $0x8] sm:$0xf]
    %v929 = vld [vmem:[#allocation10 + $0xc] sm:$0xf]
    %v930 = vld [vmem:[#allocation10 + $0x10] sm:$0xf]
    %v931 = vld [vmem:[#allocation10 + $0x14] sm:$0xf]
    %v932 = vld [vmem:[#allocation10 + $0x18] sm:$0xf]
    %v933 = vld [vmem:[#allocation10 + $0x1c] sm:$0xf]
    %v934 = vld [vmem:[#allocation10 + $0x20] sm:$0xf]
    %v935 = vld [vmem:[#allocation10 + $0x24] sm:$0xf]
    %v936 = vld [vmem:[#allocation10 + $0x28] sm:$0xf]
    %v937 = vld [vmem:[#allocation10 + $0x2c] sm:$0xf]
    %v938 = vld [vmem:[#allocation10 + $0x30] sm:$0xf]
    %v939 = vld [vmem:[#allocation10 + $0x34] sm:$0xf]
    %v940 = vld [vmem:[#allocation10 + $0x38] sm:$0xf]
    %v941 = vld [vmem:[#allocation10 + $0x3c] sm:$0xf]
    %v942 = vld [vmem:[#allocation10 + $0x40] sm:$0xf]
    %v943 = vld [vmem:[#allocation10 + $0x44] sm:$0xf]
    %v944 = vld [vmem:[#allocation10 + $0x48] sm:$0xf]
    %v945 = vld [vmem:[#allocation10 + $0x4c] sm:$0xf]
    %v946 = vld [vmem:[#allocation10 + $0x50] sm:$0xf]
    %v947 = vld [vmem:[#allocation10 + $0x54] sm:$0xf]
    %v948 = vld [vmem:[#allocation10 + $0x58] sm:$0xf]
    %v949 = vld [vmem:[#allocation10 + $0x5c] sm:$0xf]
    %v950 = vld [vmem:[#allocation10 + $0x60] sm:$0xf]
    %v951 = vld [vmem:[#allocation10 + $0x64] sm:$0xf]
    %v952 = vld [vmem:[#allocation10 + $0x68] sm:$0xf]
    %v953 = vld [vmem:[#allocation10 + $0x6c] sm:$0xf]
    %v954 = vld [vmem:[#allocation10 + $0x70] sm:$0xf]
    %v955 = vld [vmem:[#allocation10 + $0x74] sm:$0xf]
    %v956 = vld [vmem:[#allocation10 + $0x78] sm:$0xf]
    %v957 = vld [vmem:[#allocation10 + $0x7c] sm:$0xf]
    %v958 = vld [vmem:[%s8] sm:$0x1]
    %v960 = vlaneseq
    %v961 = vshrl.u32 %v960, 7
    %v962 = vsub.s32 0, %v961
    %v963 = vrot.slane %v958, %v962
    %v997 = vunpack.c.l.b16 %v926
    %v998 = vunpack.c.l.b16 %v927
    %v999 = vunpack.c.l.b16 %v928
    %v1000 = vunpack.c.l.b16 %v929
    %v1001 = vunpack.c.l.b16 %v930
    %v1002 = vunpack.c.l.b16 %v931
    %v1003 = vunpack.c.l.b16 %v932
    %v1004 = vunpack.c.l.b16 %v933
    %v1005 = vunpack.c.l.b16 %v934
    %v1006 = vunpack.c.l.b16 %v935
    %v1007 = vunpack.c.l.b16 %v936
    %v1008 = vunpack.c.l.b16 %v937
    %v1009 = vunpack.c.l.b16 %v938
    %v1010 = vunpack.c.l.b16 %v939
    %v1011 = vunpack.c.l.b16 %v940
    %v1012 = vunpack.c.l.b16 %v941
    %v1013 = vunpack.c.l.b16 %v942
    %v1014 = vunpack.c.l.b16 %v943
    %v1015 = vunpack.c.l.b16 %v944
    %v1016 = vunpack.c.l.b16 %v945
    %v1017 = vunpack.c.l.b16 %v946
    %v1018 = vunpack.c.l.b16 %v947
    %v1019 = vunpack.c.l.b16 %v948
    %v1020 = vunpack.c.l.b16 %v949
    %v1021 = vunpack.c.l.b16 %v950
    %v1022 = vunpack.c.l.b16 %v951
    %v1023 = vunpack.c.l.b16 %v952
    %v1024 = vunpack.c.l.b16 %v953
    %v1025 = vunpack.c.l.b16 %v954
    %v1026 = vunpack.c.l.b16 %v955
    %v1027 = vunpack.c.l.b16 %v956
    %v1028 = vunpack.c.l.b16 %v957
    %v1029 = vpack.c.b16 %v998, %v997
    %v1030 = vpack.c.b16 %v1000, %v999
    %v1031 = vpack.c.b16 %v1002, %v1001
    %v1032 = vpack.c.b16 %v1004, %v1003
    %v1033 = vpack.c.b16 %v1006, %v1005
    %v1034 = vpack.c.b16 %v1008, %v1007
    %v1035 = vpack.c.b16 %v1010, %v1009
    %v1036 = vpack.c.b16 %v1012, %v1011
    %v1037 = vpack.c.b16 %v1014, %v1013
    %v1038 = vpack.c.b16 %v1016, %v1015
    %v1039 = vpack.c.b16 %v1018, %v1017
    %v1040 = vpack.c.b16 %v1020, %v1019
    %v1041 = vpack.c.b16 %v1022, %v1021
    %v1042 = vpack.c.b16 %v1024, %v1023
    %v1043 = vpack.c.b16 %v1026, %v1025
    %v1044 = vpack.c.b16 %v1028, %v1027
    %1061 = vmatprep.subr.bf16.mxu0 0
    %1062 = vmatpush1.bf16.msra.mxu0 %v1029
    %1063 = vmatprep.subr.bf16.mxu0 0
    %1064 = vmatpush1.bf16.msra.mxu0 %v1030
    %1065 = vmatprep.subr.bf16.mxu0 0
    %1066 = vmatpush1.bf16.msra.mxu0 %v1031
    %1067 = vmatprep.subr.bf16.mxu0 0
    %1068 = vmatpush1.bf16.msra.mxu0 %v1032
    %1069 = vmatprep.subr.bf16.mxu0 0
    %1070 = vmatpush1.bf16.msra.mxu0 %v1033
    %1071 = vmatprep.subr.bf16.mxu0 0
    %1072 = vmatpush1.bf16.msra.mxu0 %v1034
    %1073 = vmatprep.subr.bf16.mxu0 0
    %1074 = vmatpush1.bf16.msra.mxu0 %v1035
    %1075 = vmatprep.subr.bf16.mxu0 0
    %1076 = vmatpush1.bf16.msra.mxu0 %v1036
    %1077 = vmatprep.subr.bf16.mxu0 0
    %1078 = vmatpush1.bf16.msra.mxu0 %v1037
    %1079 = vmatprep.subr.bf16.mxu0 0
    %1080 = vmatpush1.bf16.msra.mxu0 %v1038
    %1081 = vmatprep.subr.bf16.mxu0 0
    %1082 = vmatpush1.bf16.msra.mxu0 %v1039
    %1083 = vmatprep.subr.bf16.mxu0 0
    %1084 = vmatpush1.bf16.msra.mxu0 %v1040
    %1085 = vmatprep.subr.bf16.mxu0 0
    %1086 = vmatpush1.bf16.msra.mxu0 %v1041
    %1087 = vmatprep.subr.bf16.mxu0 0
    %1088 = vmatpush1.bf16.msra.mxu0 %v1042
    %1089 = vmatprep.subr.bf16.mxu0 0
    %1090 = vmatpush1.bf16.msra.mxu0 %v1043
    %1091 = vmatprep.subr.bf16.mxu0 0
    %1092 = vmatpush1.bf16.msra.mxu0 %v1044
    %1093 = vmatprep.mubr.bf16.mxu0 %v925
    %1094 = vmatmul.mubr.bf16.gmra.mrb[0].mxu0 %v924
    %v1095 = vpop.f32.mrb[0].mxu0
    %v1096 = vadd.f32 %v963, %v1095
    %v1097 = vpop.f32.mrb[0].mxu0
    %v1098 = vpop.f32.mrb[0].mxu0
    %v1099 = vadd.f32 %v963, %v1098
    %v1100 = vpop.f32.mrb[0].mxu0
    %1101 = vdwg.mxu0
    %v1102 = vmax.f32 %v1096, 0.0
    %v1103 = vmax.f32 %v1099, 0.0
    %v1104 = vpack.c.bf16 %v1103, %v1102
    %v1105 = vld [vmem:[#allocation11] sm:$0xf]
    %v1106 = vld [vmem:[#allocation11 + $0x4] sm:$0xf]
    %v1107 = vld [vmem:[#allocation11 + $0x8] sm:$0xf]
    %v1108 = vld [vmem:[#allocation11 + $0xc] sm:$0xf]
    %v1109 = vld [vmem:[#allocation11 + $0x10] sm:$0xf]
    %v1110 = vld [vmem:[#allocation11 + $0x14] sm:$0xf]
    %v1111 = vld [vmem:[#allocation11 + $0x18] sm:$0xf]
    %v1112 = vld [vmem:[#allocation11 + $0x1c] sm:$0xf]
    %v1113 = vld [vmem:[#allocation11 + $0x20] sm:$0xf]
    %v1114 = vld [vmem:[#allocation11 + $0x24] sm:$0xf]
    %v1115 = vld [vmem:[#allocation11 + $0x28] sm:$0xf]
    %v1116 = vld [vmem:[#allocation11 + $0x2c] sm:$0xf]
    %v1117 = vld [vmem:[#allocation11 + $0x30] sm:$0xf]
    %v1118 = vld [vmem:[#allocation11 + $0x34] sm:$0xf]
    %v1119 = vld [vmem:[#allocation11 + $0x38] sm:$0xf]
    %v1120 = vld [vmem:[#allocation11 + $0x3c] sm:$0xf]
    %v1121 = vld [vmem:[%s10] sm:$0x1]
    %v1123 = vlaneseq
    %v1124 = vshrl.u32 %v1123, 7
    %v1125 = vsub.s32 0, %v1124
    %v1126 = vrot.slane %v1121, %v1125
    %v1144 = vunpack.c.l.b16 %v1105
    %v1145 = vunpack.c.l.b16 %v1106
    %v1146 = vunpack.c.l.b16 %v1107
    %v1147 = vunpack.c.l.b16 %v1108
    %v1148 = vunpack.c.l.b16 %v1109
    %v1149 = vunpack.c.l.b16 %v1110
    %v1150 = vunpack.c.l.b16 %v1111
    %v1151 = vunpack.c.l.b16 %v1112
    %v1152 = vunpack.c.l.b16 %v1113
    %v1153 = vunpack.c.l.b16 %v1114
    %v1154 = vunpack.c.l.b16 %v1115
    %v1155 = vunpack.c.l.b16 %v1116
    %v1156 = vunpack.c.l.b16 %v1117
    %v1157 = vunpack.c.l.b16 %v1118
    %v1158 = vunpack.c.l.b16 %v1119
    %v1159 = vunpack.c.l.b16 %v1120
    %v1160 = vpack.c.b16 %v1145, %v1144
    %v1161 = vpack.c.b16 %v1147, %v1146
    %v1162 = vpack.c.b16 %v1149, %v1148
    %v1163 = vpack.c.b16 %v1151, %v1150
    %v1164 = vpack.c.b16 %v1153, %v1152
    %v1165 = vpack.c.b16 %v1155, %v1154
    %v1166 = vpack.c.b16 %v1157, %v1156
    %v1167 = vpack.c.b16 %v1159, %v1158
    %1176 = vmatprep.subr.bf16.mxu0 0
    %1177 = vmatpush1.bf16.msra.mxu0 %v1160
    %1178 = vmatprep.subr.bf16.mxu0 0
    %1179 = vmatpush1.bf16.msra.mxu0 %v1161
    %1180 = vmatprep.subr.bf16.mxu0 0
    %1181 = vmatpush1.bf16.msra.mxu0 %v1162
    %1182 = vmatprep.subr.bf16.mxu0 0
    %1183 = vmatpush1.bf16.msra.mxu0 %v1163
    %1184 = vmatprep.subr.bf16.mxu0 0
    %1185 = vmatpush1.bf16.msra.mxu0 %v1164
    %1186 = vmatprep.subr.bf16.mxu0 0
    %1187 = vmatpush1.bf16.msra.mxu0 %v1165
    %1188 = vmatprep.subr.bf16.mxu0 0
    %1189 = vmatpush1.bf16.msra.mxu0 %v1166
    %1190 = vmatprep.subr.bf16.mxu0 0
    %1191 = vmatpush1.bf16.msra.mxu0 %v1167
    %1192 = vmatprep.subr.bf16.mxu0 0
    %1193 = vmatpush1.bf16.msra.mxu0 0
    %1194 = vmatprep.subr.bf16.mxu0 0
    %1195 = vmatpush1.bf16.msra.mxu0 0
    %1196 = vmatprep.subr.bf16.mxu0 0
    %1197 = vmatpush1.bf16.msra.mxu0 0
    %1198 = vmatprep.subr.bf16.mxu0 0
    %1199 = vmatpush1.bf16.msra.mxu0 0
    %1200 = vmatprep.subr.bf16.mxu0 0
    %1201 = vmatpush1.bf16.msra.mxu0 0
    %1202 = vmatprep.subr.bf16.mxu0 0
    %1203 = vmatpush1.bf16.msra.mxu0 0
    %1204 = vmatprep.subr.bf16.mxu0 0
    %1205 = vmatpush1.bf16.msra.mxu0 0
    %1206 = vmatprep.subr.bf16.mxu0 0
    %1207 = vmatpush1.bf16.msra.mxu0 0
    %1208 = vmatprep.mubr.bf16.mxu0 0
    %1209 = vmatmul.mubr.bf16.gmra.mrb[0].mxu0 %v1104
    %v1210 = vpop.f32.mrb[0].mxu0
    %v1211 = vadd.f32 %v1126, %v1210
    %v1212 = vpop.f32.mrb[0].mxu0
    %v1213 = vpop.f32.mrb[0].mxu0
    %v1214 = vadd.f32 %v1126, %v1213
    %v1215 = vpop.f32.mrb[0].mxu0
    %1216 = vdwg.mxu0
    %v1217 = vmax.f32 %v1211, 0.0
    %v1218 = vmax.f32 %v1214, 0.0
    %v1219 = vpack.c.bf16 %v1218, %v1217
    %v1220 = vld [vmem:[#allocation13] sm:$0xf]
    %v1221 = vld [vmem:[#allocation13 + $0x4] sm:$0xf]
    %v1222 = vld [vmem:[#allocation13 + $0x8] sm:$0xf]
    %v1223 = vld [vmem:[#allocation13 + $0xc] sm:$0xf]
    %v1224 = vld [vmem:[#allocation13 + $0x10] sm:$0xf]
    %v1225 = vld [vmem:[#allocation13 + $0x14] sm:$0xf]
    %v1226 = vld [vmem:[#allocation13 + $0x18] sm:$0xf]
    %v1227 = vld [vmem:[#allocation13 + $0x1c] sm:$0xf]
    %v1228 = vld [vmem:[#allocation13 + $0x20] sm:$0xf]
    %v1229 = vld [vmem:[#allocation13 + $0x24] sm:$0xf]
    %v1230 = vld [vmem:[#allocation13 + $0x28] sm:$0xf]
    %v1231 = vld [vmem:[#allocation13 + $0x2c] sm:$0xf]
    %v1232 = vld [vmem:[#allocation13 + $0x30] sm:$0xf]
    %v1233 = vld [vmem:[#allocation13 + $0x34] sm:$0xf]
    %v1234 = vld [vmem:[#allocation13 + $0x38] sm:$0xf]
    %v1235 = vld [vmem:[#allocation13 + $0x3c] sm:$0xf]
    %v1236 = vld [vmem:[%s12] sm:$0x1]
    %v1238 = vlaneseq
    %v1239 = vshrl.u32 %v1238, 7
    %v1240 = vsub.s32 0, %v1239
    %v1241 = vrot.slane %v1236, %v1240
    %v1259 = vunpack.c.l.b16 %v1220
    %v1260 = vunpack.c.l.b16 %v1221
    %v1261 = vunpack.c.l.b16 %v1222
    %v1262 = vunpack.c.l.b16 %v1223
    %v1263 = vunpack.c.l.b16 %v1224
    %v1264 = vunpack.c.l.b16 %v1225
    %v1265 = vunpack.c.l.b16 %v1226
    %v1266 = vunpack.c.l.b16 %v1227
    %v1267 = vunpack.c.l.b16 %v1228
    %v1268 = vunpack.c.l.b16 %v1229
    %v1269 = vunpack.c.l.b16 %v1230
    %v1270 = vunpack.c.l.b16 %v1231
    %v1271 = vunpack.c.l.b16 %v1232
    %v1272 = vunpack.c.l.b16 %v1233
    %v1273 = vunpack.c.l.b16 %v1234
    %v1274 = vunpack.c.l.b16 %v1235
    %v1275 = vpack.c.b16 %v1260, %v1259
    %v1276 = vpack.c.b16 %v1262, %v1261
    %v1277 = vpack.c.b16 %v1264, %v1263
    %v1278 = vpack.c.b16 %v1266, %v1265
    %v1279 = vpack.c.b16 %v1268, %v1267
    %v1280 = vpack.c.b16 %v1270, %v1269
    %v1281 = vpack.c.b16 %v1272, %v1271
    %v1282 = vpack.c.b16 %v1274, %v1273
    %1291 = vmatprep.subr.bf16.mxu0 0
    %1292 = vmatpush1.bf16.msra.mxu0 %v1275
    %1293 = vmatprep.subr.bf16.mxu0 0
    %1294 = vmatpush1.bf16.msra.mxu0 %v1276
    %1295 = vmatprep.subr.bf16.mxu0 0
    %1296 = vmatpush1.bf16.msra.mxu0 %v1277
    %1297 = vmatprep.subr.bf16.mxu0 0
    %1298 = vmatpush1.bf16.msra.mxu0 %v1278
    %1299 = vmatprep.subr.bf16.mxu0 0
    %1300 = vmatpush1.bf16.msra.mxu0 %v1279
    %1301 = vmatprep.subr.bf16.mxu0 0
    %1302 = vmatpush1.bf16.msra.mxu0 %v1280
    %1303 = vmatprep.subr.bf16.mxu0 0
    %1304 = vmatpush1.bf16.msra.mxu0 %v1281
    %1305 = vmatprep.subr.bf16.mxu0 0
    %1306 = vmatpush1.bf16.msra.mxu0 %v1282
    %1307 = vmatprep.subr.bf16.mxu0 0
    %1308 = vmatpush1.bf16.msra.mxu0 0
    %1309 = vmatprep.subr.bf16.mxu0 0
    %1310 = vmatpush1.bf16.msra.mxu0 0
    %1311 = vmatprep.subr.bf16.mxu0 0
    %1312 = vmatpush1.bf16.msra.mxu0 0
    %1313 = vmatprep.subr.bf16.mxu0 0
    %1314 = vmatpush1.bf16.msra.mxu0 0
    %1315 = vmatprep.subr.bf16.mxu0 0
    %1316 = vmatpush1.bf16.msra.mxu0 0
    %1317 = vmatprep.subr.bf16.mxu0 0
    %1318 = vmatpush1.bf16.msra.mxu0 0
    %1319 = vmatprep.subr.bf16.mxu0 0
    %1320 = vmatpush1.bf16.msra.mxu0 0
    %1321 = vmatprep.subr.bf16.mxu0 0
    %1322 = vmatpush1.bf16.msra.mxu0 0
    %1323 = vmatprep.mubr.bf16.mxu0 0
    %1324 = vmatmul.mubr.bf16.gmra.mrb[0].mxu0 %v1219
    %v1325 = vpop.f32.mrb[0].mxu0
    %v1326 = vadd.f32 %v1241, %v1325
    %v1327 = vpop.f32.mrb[0].mxu0
    %v1328 = vpop.f32.mrb[0].mxu0
    %v1329 = vadd.f32 %v1241, %v1328
    %v1330 = vpop.f32.mrb[0].mxu0
    %1331 = vdwg.mxu0
    %v1332 = vmax.f32 %v1326, 0.0
    %v1333 = vmax.f32 %v1329, 0.0
    %v1334 = vpack.c.bf16 %v1333, %v1332
    %v1335 = vld [vmem:[#allocation14] sm:$0xf]
    %v1336 = vld [vmem:[#allocation14 + $0x4] sm:$0xf]
    %v1337 = vld [vmem:[#allocation14 + $0x8] sm:$0xf]
    %v1338 = vld [vmem:[#allocation14 + $0xc] sm:$0xf]
    %v1339 = vld [vmem:[#allocation14 + $0x10] sm:$0xf]
    %v1340 = vld [vmem:[#allocation14 + $0x14] sm:$0xf]
    %v1341 = vld [vmem:[#allocation14 + $0x18] sm:$0xf]
    %v1342 = vld [vmem:[#allocation14 + $0x1c] sm:$0xf]
    %v1343 = vld [vmem:[#allocation14 + $0x20] sm:$0xf]
    %v1344 = vld [vmem:[#allocation14 + $0x24] sm:$0xf]
    %v1345 = vld [vmem:[#allocation14 + $0x28] sm:$0xf]
    %v1346 = vld [vmem:[#allocation14 + $0x2c] sm:$0xf]
    %v1347 = vld [vmem:[#allocation14 + $0x30] sm:$0xf]
    %v1348 = vld [vmem:[#allocation14 + $0x34] sm:$0xf]
    %v1349 = vld [vmem:[#allocation14 + $0x38] sm:$0xf]
    %v1350 = vld [vmem:[#allocation14 + $0x3c] sm:$0xf]
    %v1351 = vld [vmem:[%s14] sm:$0x1]
    %v1353 = vlaneseq
    %v1354 = vshrl.u32 %v1353, 7
    %v1355 = vsub.s32 0, %v1354
    %v1356 = vrot.slane %v1351, %v1355
    %v1374 = vunpack.c.l.b16 %v1335
    %v1375 = vunpack.c.l.b16 %v1336
    %v1376 = vunpack.c.l.b16 %v1337
    %v1377 = vunpack.c.l.b16 %v1338
    %v1378 = vunpack.c.l.b16 %v1339
    %v1379 = vunpack.c.l.b16 %v1340
    %v1380 = vunpack.c.l.b16 %v1341
    %v1381 = vunpack.c.l.b16 %v1342
    %v1382 = vunpack.c.l.b16 %v1343
    %v1383 = vunpack.c.l.b16 %v1344
    %v1384 = vunpack.c.l.b16 %v1345
    %v1385 = vunpack.c.l.b16 %v1346
    %v1386 = vunpack.c.l.b16 %v1347
    %v1387 = vunpack.c.l.b16 %v1348
    %v1388 = vunpack.c.l.b16 %v1349
    %v1389 = vunpack.c.l.b16 %v1350
    %v1390 = vpack.c.b16 %v1375, %v1374
    %v1391 = vpack.c.b16 %v1377, %v1376
    %v1392 = vpack.c.b16 %v1379, %v1378
    %v1393 = vpack.c.b16 %v1381, %v1380
    %v1394 = vpack.c.b16 %v1383, %v1382
    %v1395 = vpack.c.b16 %v1385, %v1384
    %v1396 = vpack.c.b16 %v1387, %v1386
    %v1397 = vpack.c.b16 %v1389, %v1388
    %1406 = vmatprep.subr.bf16.mxu0 0
    %1407 = vmatpush1.bf16.msra.mxu0 %v1390
    %1408 = vmatprep.subr.bf16.mxu0 0
    %1409 = vmatpush1.bf16.msra.mxu0 %v1391
    %1410 = vmatprep.subr.bf16.mxu0 0
    %1411 = vmatpush1.bf16.msra.mxu0 %v1392
    %1412 = vmatprep.subr.bf16.mxu0 0
    %1413 = vmatpush1.bf16.msra.mxu0 %v1393
    %1414 = vmatprep.subr.bf16.mxu0 0
    %1415 = vmatpush1.bf16.msra.mxu0 %v1394
    %1416 = vmatprep.subr.bf16.mxu0 0
    %1417 = vmatpush1.bf16.msra.mxu0 %v1395
    %1418 = vmatprep.subr.bf16.mxu0 0
    %1419 = vmatpush1.bf16.msra.mxu0 %v1396
    %1420 = vmatprep.subr.bf16.mxu0 0
    %1421 = vmatpush1.bf16.msra.mxu0 %v1397
    %1422 = vmatprep.subr.bf16.mxu0 0
    %1423 = vmatpush1.bf16.msra.mxu0 0
    %1424 = vmatprep.subr.bf16.mxu0 0
    %1425 = vmatpush1.bf16.msra.mxu0 0
    %1426 = vmatprep.subr.bf16.mxu0 0
    %1427 = vmatpush1.bf16.msra.mxu0 0
    %1428 = vmatprep.subr.bf16.mxu0 0
    %1429 = vmatpush1.bf16.msra.mxu0 0
    %1430 = vmatprep.subr.bf16.mxu0 0
    %1431 = vmatpush1.bf16.msra.mxu0 0
    %1432 = vmatprep.subr.bf16.mxu0 0
    %1433 = vmatpush1.bf16.msra.mxu0 0
    %1434 = vmatprep.subr.bf16.mxu0 0
    %1435 = vmatpush1.bf16.msra.mxu0 0
    %1436 = vmatprep.subr.bf16.mxu0 0
    %1437 = vmatpush1.bf16.msra.mxu0 0
    %1438 = vmatprep.mubr.bf16.mxu0 0
    %1439 = vmatmul.mubr.bf16.gmra.mrb[0].mxu0 %v1334
    %v1440 = vpop.f32.mrb[0].mxu0
    %v1441 = vadd.f32 %v1356, %v1440
    %v1442 = vpop.f32.mrb[0].mxu0
    %v1443 = vpop.f32.mrb[0].mxu0
    %v1444 = vadd.f32 %v1356, %v1443
    %v1445 = vpop.f32.mrb[0].mxu0
    %1446 = vdwg.mxu0
    %1447 = vst [vmem:[#allocation16] sm:$0xff] %v1441
    %1448 = vst [vmem:[#allocation16 + $0x8] sm:$0xff] %v1444
    // Predicated region
    $region94: #{tpu_custom_call.1} parent=1 // pred_check
      _
    $region95: #{tpu_custom_call.1} parent=1 // pred_check_branch
      %1450 = sbr.rel (0) target = $region97
    $region96: #{tpu_custom_call.1} parent=1 // pred_region
      %s1452 = ssub.s32 256, 256
      %1453 = vsyncadd [#allocation4], %s1452
      %s1454 = sshll.u32 [#allocation16], 4
      %s1455 = int_to_ptr.vmem [resolvable:$true] %s1454
      %1460 = dma.vmem_to_hbm [thread:$0]  %s1455, 256, %s15, [#allocation4], 128, 128, 8
    $region97: #{tpu_custom_call.1} parent=1 // pred_fallthru
      _
    // Predicated region
    $region98: #{tpu_custom_call.1} parent=1 // pred_check
      _
    $region99: #{tpu_custom_call.1} parent=1 // pred_check_branch
      %1462 = sbr.rel (0) target = $region101
    $region100: #{tpu_custom_call.1} parent=1 // pred_region
      %1463 = dma.done [#allocation4], 256
    $region101: #{tpu_custom_call.1} parent=1 // pred_fallthru
      _
    %1464 = vsyncpa [#allocation3], 1
    %1465 = vsyncpa [#allocation6], 1
    %1466 = vsyncpa [#allocation9], 1
    %1467 = vsyncpa [#allocation12], 1
    %1468 = vsyncpa [#allocation15], 1
    %1469 = vsyncpa [#allocation4], 1

</llo_original>
